<compile_context>
chip_gen: v7x
topology: tpu7x:2x2x1
jax: 0.10.0
libtpu: 0.0.40
codegen_flags: <defaults>
</compile_context>

<pallas_src>
import jax
import jax.numpy as jnp
import numpy as np
from jax import lax
from jax.experimental import pallas as pl
from jax.experimental.pallas import tpu as pltpu

FEATURES_DIM = 512        # CHANNELS_NUM_IN_LAST_CONV['resnet18']
FC_OUTPUT_DIM = 128
GEM_P_INIT = 3.0          # GeM() default p (learnable Parameter init)
GEM_EPS = 1e-6            # GeM eps
LOG_GEM_EPS = float(np.log(GEM_EPS))
L2_EPS = 1e-12            # F.normalize eps


def _vmem_temp_budget_bytes():
    """Budget (bytes) for the in-kernel f32 temporaries, per TPU generation."""
    try:
        cap = pltpu.get_tpu_info().vmem_capacity_bytes
    except Exception:
        cap = 64 << 20
    # Stay well inside the default scoped VMEM (v5e 16 MiB / v6e 32 MiB / v7x 32 MiB)
    # and leave room for the double-buffered (tiny, Cin=3) input tiles + weights.
    return max(1 << 20, min(cap // 8, 6 << 20))


def _pick_row_tile(ho, wo, c):
    """Largest divisor of Ho whose ~4x f32 (rows*Wo, C) temporaries fit the budget."""
    budget = _vmem_temp_budget_bytes()
    per_row = wo * c * 4 * 4            # conv tile + log/exp temporaries, f32
    max_rows = max(1, budget // per_row)
    best = 1
    for d in range(1, ho + 1):
        if ho % d == 0 and d <= max_rows:
            best = d
    return best


# --------------------------- Fused Pallas kernel ------------------------------

def fused_stem_gem_head(x_nchw, conv_w, conv_b, gem_p, fc_w, fc_b):
    """conv3x3/s2/p1 + ReLU stem -> L2Norm -> GeM -> Flatten -> Linear -> L2Norm.

    One pallas_call, grid = (B, n_row_tiles).  No intermediate slab in HBM.
    """
    B, Cin, H, W = x_nchw.shape
    KH, KW, _, Cout = conv_w.shape
    F = fc_w.shape[-1]
    Ho, Wo = (H + 1) // 2, (W + 1) // 2
    S = Ho * Wo
    inv_s = 1.0 / float(S)

    # --- wrapper glue (all ~1x input size; input has only Cin=3 channels) -----
    # Cast to bf16 BEFORE the layout shuffle, then NCHW -> NHWC and zero pad so
    # padded extents are even (extra right/bottom pad rows are never read).
    x = jnp.transpose(x_nchw.astype(jnp.bfloat16), (0, 2, 3, 1))
    Hp, Wp = 2 * (Ho + 1), 2 * (Wo + 1)
    x = jnp.pad(x, ((0, 0), (1, Hp - H - 1), (1, Wp - W - 1), (0, 0)))

    # Even/odd parity split of rows and cols: every stride-2 conv tap becomes a
    # contiguous slice of one parity plane (no strided loads in-kernel).
    Hh, Wh = Hp // 2, Wp // 2                                   # = Ho+1, Wo+1
    xsp = x.reshape(B, Hh, 2, Wh, 2, Cin)
    xsp = jnp.transpose(xsp, (0, 2, 4, 1, 3, 5)).reshape(B, 4, Hh, Wh, Cin)

    # Output-row tiling with a one-half-row halo gathered per tile.
    tho = _pick_row_tile(Ho, Wo, Cout)
    n_t = Ho // tho
    row_idx = jnp.arange(n_t)[:, None] * tho + jnp.arange(tho + 1)[None, :]
    slab = jnp.transpose(xsp[:, :, row_idx], (0, 2, 1, 3, 4, 5))
    R = 4 * (tho + 1)
    slab = slab.reshape(B, n_t, R, Wh, Cin)                     # bf16, ~1.0x input

    w2d = conv_w.reshape(KH * KW * Cin, Cout).astype(jnp.bfloat16)
    bias = conv_b.reshape(1, Cout).astype(jnp.float32)
    fcw = fc_w.astype(jnp.float32)
    fcb = fc_b.reshape(1, F).astype(jnp.float32)

    def kernel(p_ref, slab_ref, w_ref, b_ref, fcw_ref, fcb_ref, out_ref, gacc_ref):
        s_idx = pl.program_id(1)

        @pl.when(s_idx == 0)
        def _():
            gacc_ref[...] = jnp.zeros_like(gacc_ref)

        # In-kernel im2col: 9 contiguous taps from the parity-split halo tile.
        xin = slab_ref[...][0, 0].astype(jnp.float32)           # (R, Wh, Cin)
        taps = []
        for dy in range(KH):
            for dx in range(KW):
                r0 = ((dy & 1) * 2 + (dx & 1)) * (tho + 1) + dy // 2
                c0 = dx // 2
                taps.append(xin[r0:r0 + tho, c0:c0 + Wo, :])
        patch = jnp.concatenate(taps, axis=-1).reshape(tho * Wo, KH * KW * Cin)

        # Conv + bias + ReLU: bf16 operands, f32 MXU accumulation.
        a = jnp.dot(patch.astype(jnp.bfloat16), w_ref[...],
                    preferred_element_type=jnp.float32)
        a = jnp.maximum(a + b_ref[...], 0.0)                    # (tho*Wo, Cout) f32

        # Channel L2Norm and clamp(.,eps)^p fused in log domain:
        #   max(x/||x||, eps)^p = exp(p * max(log x - log ||x||, log eps))
        p = p_ref[0]                                            # GeM exponent (SMEM)
        ss = jnp.sum(a * a, axis=-1, keepdims=True)
        log_n = 0.5 * jnp.log(jnp.maximum(ss, L2_EPS * L2_EPS))
        log_x = jnp.log(jnp.maximum(a, 1e-30))                  # a >= 0 post-ReLU
        xp = jnp.exp(p * jnp.maximum(log_x - log_n, LOG_GEM_EPS))
        gacc_ref[...] += jnp.sum(xp, axis=0, keepdims=True)     # (1, Cout)

        @pl.when(s_idx == pl.num_programs(1) - 1)
        def _():
            # GeM finalize -> Flatten -> Linear -> final L2Norm (head fused here).
            g = jnp.exp(jnp.log(gacc_ref[...] * inv_s) / p)     # (1, Cout)
            y = jnp.dot(g, fcw_ref[...],
                        preferred_element_type=jnp.float32) + fcb_ref[...]
            yss = jnp.sum(y * y, axis=-1, keepdims=True)
            out_ref[...] = (y * lax.rsqrt(jnp.maximum(yss, L2_EPS * L2_EPS))
                            ).reshape(1, 1, F)

    out = pl.pallas_call(
        kernel,
        out_shape=jax.ShapeDtypeStruct((B, 1, F), jnp.float32),
        grid=(B, n_t),
        in_specs=[
            pl.BlockSpec(memory_space=pltpu.MemorySpace.SMEM),               # GeM p
            pl.BlockSpec((1, 1, R, Wh, Cin), lambda b, s: (b, s, 0, 0, 0)),  # input tile
            pl.BlockSpec((KH * KW * Cin, Cout), lambda b, s: (0, 0)),        # conv W
            pl.BlockSpec((1, Cout), lambda b, s: (0, 0)),                    # conv bias
            pl.BlockSpec((Cout, F), lambda b, s: (0, 0)),                    # fc W
            pl.BlockSpec((1, F), lambda b, s: (0, 0)),                       # fc bias
        ],
        out_specs=pl.BlockSpec((1, 1, F), lambda b, s: (b, 0, 0)),
        scratch_shapes=[pltpu.VMEM((1, Cout), jnp.float32)],
        compiler_params=pltpu.CompilerParams(
            dimension_semantics=("parallel", "arbitrary")),
    )(gem_p.astype(jnp.float32), slab, w2d, bias, fcw, fcb)

    return out.reshape(B, F)


def geolocalization_forward(x_nchw, params):
    # TODO(synk): the full pretrained torchvision ResNet-18 trunk (20 conv/BN blocks,
    # IMAGENET1K_V1 weights) has no in-script equivalent; a deterministic single
    # conv3x3-s2 + ReLU stem producing features_dim=512 channels stands in for it.
    return fused_stem_gem_head(x_nchw, params["conv_w"], params["conv_b"],
                               params["gem_p"], params["fc_w"], params["fc_b"])


# --------------------------- Pure-JAX reference ------------------------------

def reference_forward(x_nchw, params):
    # Matches the kernel's precision choices: bf16 conv operands, f32 accumulation,
    # f32 aggregation/head math.
    w_oihw = jnp.transpose(params["conv_w"], (3, 2, 0, 1)).astype(jnp.bfloat16)
    feat = lax.conv_general_dilated(
        x_nchw.astype(jnp.bfloat16), w_oihw, window_strides=(2, 2),
        padding=((1, 1), (1, 1)), dimension_numbers=("NCHW", "OIHW", "NCHW"),
        preferred_element_type=jnp.float32)
    feat = jnp.maximum(feat + params["conv_b"][None, :, None, None], 0.0)
    p = params["gem_p"][0]
    n = jnp.sqrt(jnp.sum(feat * feat, axis=1, keepdims=True))
    feat = feat / jnp.maximum(n, L2_EPS)                        # L2Norm over channels
    g = jnp.mean(jnp.maximum(feat, GEM_EPS) ** p, axis=(2, 3)) ** (1.0 / p)   # GeM
    y = g @ params["fc_w"] + params["fc_b"]                     # Flatten -> Linear
    yn = jnp.sqrt(jnp.sum(y * y, axis=1, keepdims=True))
    return y / jnp.maximum(yn, L2_EPS)                          # final L2Norm


# --------------------------- Main --------------------------------------------

if __name__ == "__main__":
    key = jax.random.PRNGKey(0)
    k_x, k_cw, k_cb, k_fw, k_fb = jax.random.split(key, 5)

    B, Cin, H, W = 2, 3, 16, 16
    x = jax.random.normal(k_x, (B, Cin, H, W), dtype=jnp.float32)

    params = {
        # stand-in backbone stem (HWIO layout)
        "conv_w": 0.1 * jax.random.normal(k_cw, (3, 3, Cin, FEATURES_DIM), jnp.float32),
        "conv_b": 0.01 * jax.random.normal(k_cb, (FEATURES_DIM,), jnp.float32),
        # GeM learnable exponent, init = 3.0 (shape (1,) as in nn.Parameter(torch.ones(1)*p))
        "gem_p": jnp.array([GEM_P_INIT], dtype=jnp.float32),
        # nn.Linear(features_dim, fc_output_dim), stored as (in, out)
        "fc_w": 0.05 * jax.random.normal(k_fw, (FEATURES_DIM, FC_OUTPUT_DIM), jnp.float32),
        "fc_b": 0.01 * jax.random.normal(k_fb, (FC_OUTPUT_DIM,), jnp.float32),
    }

    out = geolocalization_forward(x, params)
    out = jax.block_until_ready(out)

    ref = jax.block_until_ready(reference_forward(x, params))
    np.testing.assert_allclose(np.asarray(out), np.asarray(ref), rtol=2e-3, atol=2e-4)
    assert out.shape == (B, FC_OUTPUT_DIM)

    print("KERNEL_OK")
</pallas_src>

<mosaic_0001>
module attributes {stable_mosaic.version = 11 : i64} {
  func.func @kernel(%arg0: i32, %arg1: i32, %arg2: memref<1xf32, #tpu.memory_space<smem>>, %arg3: memref<1x1x36x9x3xbf16, #tpu.memory_space<vmem>>, %arg4: memref<27x512xbf16, #tpu.memory_space<vmem>>, %arg5: memref<1x512xf32, #tpu.memory_space<vmem>>, %arg6: memref<512x128xf32, #tpu.memory_space<vmem>>, %arg7: memref<1x128xf32, #tpu.memory_space<vmem>>, %arg8: memref<1x1x128xf32, #tpu.memory_space<vmem>>, %arg9: memref<1x512xf32, #tpu.memory_space<vmem>>) attributes {dimension_semantics = [#tpu.dimension_semantics<parallel>, #tpu.dimension_semantics<arbitrary>], iteration_bounds = array<i64: 2, 1>, scalar_prefetch = 0 : i64, scratch_operands = 1 : i64, tpu.core_type = #tpu.core_type<tc>, window_params = [{transform_indices = @transform_0, window_bounds = array<i64: 1>}, {transform_indices = @transform_1, window_bounds = array<i64: 1, 1, 36, 9, 3>}, {pipeline_mode = #tpu.pipeline_mode<synchronous>, transform_indices = @transform_2, window_bounds = array<i64: 27, 512>}, {pipeline_mode = #tpu.pipeline_mode<synchronous>, transform_indices = @transform_3, window_bounds = array<i64: 1, 512>}, {pipeline_mode = #tpu.pipeline_mode<synchronous>, transform_indices = @transform_4, window_bounds = array<i64: 512, 128>}, {pipeline_mode = #tpu.pipeline_mode<synchronous>, transform_indices = @transform_5, window_bounds = array<i64: 1, 128>}, {transform_indices = @transform_6, window_bounds = array<i64: 1, 1, 128>}]} {
    %c0_i32 = arith.constant 0 : i32
    %0 = arith.cmpi eq, %arg1, %c0_i32 : i32
    %1 = arith.extui %0 : i1 to i32
    %c0_i32_0 = arith.constant 0 : i32
    %2 = arith.cmpi ne, %1, %c0_i32_0 : i32
    scf.if %2 {
      %cst_23 = arith.constant 0.000000e+00 : f32
      %52 = vector.broadcast %cst_23 : f32 to vector<1x512xf32>
      %c0_24 = arith.constant 0 : index
      %c0_25 = arith.constant 0 : index
      %53 = vector.load %arg9[%c0_24, %c0_25] : memref<1x512xf32, #tpu.memory_space<vmem>>, vector<1x512xf32>
      tpu.vector_store %arg9[%c0_24, %c0_25], %52 {strides = array<i32>} : memref<1x512xf32, #tpu.memory_space<vmem>>, vector<1x512xf32>,
    } else {
    }
    %c0 = arith.constant 0 : index
    %c0_1 = arith.constant 0 : index
    %c0_2 = arith.constant 0 : index
    %c0_3 = arith.constant 0 : index
    %c0_4 = arith.constant 0 : index
    %3 = vector.load %arg3[%c0, %c0_1, %c0_2, %c0_3, %c0_4] : memref<1x1x36x9x3xbf16, #tpu.memory_space<vmem>>, vector<1x1x36x9x3xbf16>
    %4 = vector.shape_cast %3 : vector<1x1x36x9x3xbf16> to vector<36x9x3xbf16>
    %5 = arith.extf %4 : vector<36x9x3xbf16> to vector<36x9x3xf32>
    %6 = vector.extract_strided_slice %5 {offsets = [0, 0, 0], sizes = [8, 8, 3], strides = [1, 1, 1]} : vector<36x9x3xf32> to vector<8x8x3xf32>
    %7 = vector.extract_strided_slice %5 {offsets = [9, 0, 0], sizes = [8, 8, 3], strides = [1, 1, 1]} : vector<36x9x3xf32> to vector<8x8x3xf32>
    %8 = vector.extract_strided_slice %5 {offsets = [0, 1, 0], sizes = [8, 8, 3], strides = [1, 1, 1]} : vector<36x9x3xf32> to vector<8x8x3xf32>
    %9 = vector.extract_strided_slice %5 {offsets = [18, 0, 0], sizes = [8, 8, 3], strides = [1, 1, 1]} : vector<36x9x3xf32> to vector<8x8x3xf32>
    %10 = vector.extract_strided_slice %5 {offsets = [27, 0, 0], sizes = [8, 8, 3], strides = [1, 1, 1]} : vector<36x9x3xf32> to vector<8x8x3xf32>
    %11 = vector.extract_strided_slice %5 {offsets = [18, 1, 0], sizes = [8, 8, 3], strides = [1, 1, 1]} : vector<36x9x3xf32> to vector<8x8x3xf32>
    %12 = vector.extract_strided_slice %5 {offsets = [1, 0, 0], sizes = [8, 8, 3], strides = [1, 1, 1]} : vector<36x9x3xf32> to vector<8x8x3xf32>
    %13 = vector.extract_strided_slice %5 {offsets = [10, 0, 0], sizes = [8, 8, 3], strides = [1, 1, 1]} : vector<36x9x3xf32> to vector<8x8x3xf32>
    %14 = vector.extract_strided_slice %5 {offsets = [1, 1, 0], sizes = [8, 8, 3], strides = [1, 1, 1]} : vector<36x9x3xf32> to vector<8x8x3xf32>
    %15 = tpu.concatenate %6, %7, %8, %9, %10, %11, %12, %13, %14 in 2 : vector<8x8x3xf32>, vector<8x8x3xf32>, vector<8x8x3xf32>, vector<8x8x3xf32>, vector<8x8x3xf32>, vector<8x8x3xf32>, vector<8x8x3xf32>, vector<8x8x3xf32>, vector<8x8x3xf32> -> vector<8x8x27xf32>
    %16 = vector.shape_cast %15 : vector<8x8x27xf32> to vector<64x27xf32>
    %17 = arith.truncf %16 : vector<64x27xf32> to vector<64x27xbf16>
    %c0_5 = arith.constant 0 : index
    %c0_6 = arith.constant 0 : index
    %18 = vector.load %arg4[%c0_5, %c0_6] : memref<27x512xbf16, #tpu.memory_space<vmem>>, vector<27x512xbf16>
    %cst = arith.constant dense<0.000000e+00> : vector<64x512xf32>
    %19 = tpu.matmul %17, %18, %cst {dimension_numbers = #tpu.dot_dimension_numbers<[1], [0], [0], [1], [0, 0, 1, 1], [], []>} : vector<64x27xbf16>, vector<27x512xbf16>, vector<64x512xf32> -> vector<64x512xf32>
    %c0_7 = arith.constant 0 : index
    %c0_8 = arith.constant 0 : index
    %20 = vector.load %arg5[%c0_7, %c0_8] : memref<1x512xf32, #tpu.memory_space<vmem>>, vector<1x512xf32>
    %21 = vector.broadcast %20 : vector<1x512xf32> to vector<64x512xf32>
    %22 = arith.addf %19, %21 : vector<64x512xf32>
    %cst_9 = arith.constant 0.000000e+00 : f32
    %23 = vector.broadcast %cst_9 : f32 to vector<64x512xf32>
    %24 = arith.maximumf %22, %23 : vector<64x512xf32>
    %c0_10 = arith.constant 0 : index
    %25 = memref.load %arg2[%c0_10] : memref<1xf32, #tpu.memory_space<smem>>
    %26 = arith.mulf %24, %24 : vector<64x512xf32>
    %cst_11 = arith.constant dense<0.000000e+00> : vector<64xf32>
    %27 = vector.multi_reduction <add>, %26, %cst_11 [1] : vector<64x512xf32> to vector<64xf32>
    %28 = vector.shape_cast %27 : vector<64xf32> to vector<64x1xf32>
    %cst_12 = arith.constant 1.000000e-24 : f32
    %29 = vector.broadcast %cst_12 : f32 to vector<64x1xf32>
    %30 = arith.maximumf %28, %29 : vector<64x1xf32>
    %31 = math.log %30 : vector<64x1xf32>
    %cst_13 = arith.constant 5.000000e-01 : f32
    %32 = vector.broadcast %cst_13 : f32 to vector<64x1xf32>
    %33 = arith.mulf %32, %31 : vector<64x1xf32>
    %cst_14 = arith.constant 1.000000e-30 : f32
    %34 = vector.broadcast %cst_14 : f32 to vector<64x512xf32>
    %35 = arith.maximumf %24, %34 : vector<64x512xf32>
    %36 = math.log %35 : vector<64x512xf32>
    %37 = vector.broadcast %33 : vector<64x1xf32> to vector<64x512xf32>
    %38 = arith.subf %36, %37 : vector<64x512xf32>
    %cst_15 = arith.constant -13.8155107 : f32
    %39 = vector.broadcast %cst_15 : f32 to vector<64x512xf32>
    %40 = arith.maximumf %38, %39 : vector<64x512xf32>
    %41 = vector.broadcast %25 : f32 to vector<64x512xf32>
    %42 = arith.mulf %41, %40 : vector<64x512xf32>
    %43 = math.exp %42 : vector<64x512xf32>
    %c0_16 = arith.constant 0 : index
    %c0_17 = arith.constant 0 : index
    %44 = vector.load %arg9[%c0_16, %c0_17] : memref<1x512xf32, #tpu.memory_space<vmem>>, vector<1x512xf32>
    %cst_18 = arith.constant dense<0.000000e+00> : vector<512xf32>
    %45 = vector.multi_reduction <add>, %43, %cst_18 [0] : vector<64x512xf32> to vector<512xf32>
    %46 = vector.shape_cast %45 : vector<512xf32> to vector<1x512xf32>
    %47 = arith.addf %44, %46 : vector<1x512xf32>
    %c0_19 = arith.constant 0 : index
    %c0_20 = arith.constant 0 : index
    %48 = vector.load %arg9[%c0_19, %c0_20] : memref<1x512xf32, #tpu.memory_space<vmem>>, vector<1x512xf32>
    tpu.vector_store %arg9[%c0_19, %c0_20], %47 {strides = array<i32>} : memref<1x512xf32, #tpu.memory_space<vmem>>, vector<1x512xf32>,
    %c0_i32_21 = arith.constant 0 : i32
    %49 = arith.cmpi eq, %arg1, %c0_i32_21 : i32
    %50 = arith.extui %49 : i1 to i32
    %c0_i32_22 = arith.constant 0 : i32
    %51 = arith.cmpi ne, %50, %c0_i32_22 : i32
    scf.if %51 {
      %c0_23 = arith.constant 0 : index
      %c0_24 = arith.constant 0 : index
      %52 = vector.load %arg9[%c0_23, %c0_24] : memref<1x512xf32, #tpu.memory_space<vmem>>, vector<1x512xf32>
      %cst_25 = arith.constant 1.562500e-02 : f32
      %53 = vector.broadcast %cst_25 : f32 to vector<1x512xf32>
      %54 = arith.mulf %52, %53 : vector<1x512xf32>
      %55 = math.log %54 : vector<1x512xf32>
      %56 = vector.broadcast %25 : f32 to vector<1x512xf32>
      %57 = arith.divf %55, %56 : vector<1x512xf32>
      %58 = math.exp %57 : vector<1x512xf32>
      %c0_26 = arith.constant 0 : index
      %c0_27 = arith.constant 0 : index
      %59 = vector.load %arg6[%c0_26, %c0_27] : memref<512x128xf32, #tpu.memory_space<vmem>>, vector<512x128xf32>
      %cst_28 = arith.constant dense<0.000000e+00> : vector<1x128xf32>
      %60 = tpu.matmul %58, %59, %cst_28 {dimension_numbers = #tpu.dot_dimension_numbers<[1], [0], [0], [1], [0, 0, 1, 1], [], []>} : vector<1x512xf32>, vector<512x128xf32>, vector<1x128xf32> -> vector<1x128xf32>
      %c0_29 = arith.constant 0 : index
      %c0_30 = arith.constant 0 : index
      %61 = vector.load %arg7[%c0_29, %c0_30] : memref<1x128xf32, #tpu.memory_space<vmem>>, vector<1x128xf32>
      %62 = arith.addf %60, %61 : vector<1x128xf32>
      %63 = arith.mulf %62, %62 : vector<1x128xf32>
      %cst_31 = arith.constant dense<0.000000e+00> : vector<1xf32>
      %64 = vector.multi_reduction <add>, %63, %cst_31 [1] : vector<1x128xf32> to vector<1xf32>
      %65 = vector.shape_cast %64 : vector<1xf32> to vector<1x1xf32>
      %cst_32 = arith.constant 1.000000e-24 : f32
      %66 = vector.broadcast %cst_32 : f32 to vector<1x1xf32>
      %67 = arith.maximumf %65, %66 : vector<1x1xf32>
      %68 = math.rsqrt %67 : vector<1x1xf32>
      %69 = vector.broadcast %68 : vector<1x1xf32> to vector<1x128xf32>
      %70 = arith.mulf %62, %69 : vector<1x128xf32>
      %71 = vector.shape_cast %70 : vector<1x128xf32> to vector<1x1x128xf32>
      %c0_33 = arith.constant 0 : index
      %c0_34 = arith.constant 0 : index
      %c0_35 = arith.constant 0 : index
      %72 = vector.load %arg8[%c0_33, %c0_34, %c0_35] : memref<1x1x128xf32, #tpu.memory_space<vmem>>, vector<1x1x128xf32>
      tpu.vector_store %arg8[%c0_33, %c0_34, %c0_35], %71 {strides = array<i32>} : memref<1x1x128xf32, #tpu.memory_space<vmem>>, vector<1x1x128xf32>,
    } else {
    }
    return
  }
  func.func @transform_0(%arg0: i32, %arg1: i32) -> i32 {
    %c0_i32 = arith.constant 0 : i32
    %c0_i32_0 = arith.constant 0 : i32
    return %c0_i32 : i32
  }
  func.func @transform_1(%arg0: i32, %arg1: i32) -> (i32, i32, i32, i32, i32) {
    %c0_i32 = arith.constant 0 : i32
    %c0_i32_0 = arith.constant 0 : i32
    %c0_i32_1 = arith.constant 0 : i32
    %c0_i32_2 = arith.constant 0 : i32
    return %arg0, %arg1, %c0_i32, %c0_i32_0, %c0_i32_1 : i32, i32, i32, i32, i32
  }
  func.func @transform_2(%arg0: i32, %arg1: i32) -> (i32, i32) {
    %c0_i32 = arith.constant 0 : i32
    %c0_i32_0 = arith.constant 0 : i32
    %c0_i32_1 = arith.constant 0 : i32
    return %c0_i32, %c0_i32_0 : i32, i32
  }
  func.func @transform_3(%arg0: i32, %arg1: i32) -> (i32, i32) {
    %c0_i32 = arith.constant 0 : i32
    %c0_i32_0 = arith.constant 0 : i32
    %c0_i32_1 = arith.constant 0 : i32
    return %c0_i32, %c0_i32_0 : i32, i32
  }
  func.func @transform_4(%arg0: i32, %arg1: i32) -> (i32, i32) {
    %c0_i32 = arith.constant 0 : i32
    %c0_i32_0 = arith.constant 0 : i32
    %c0_i32_1 = arith.constant 0 : i32
    return %c0_i32, %c0_i32_0 : i32, i32
  }
  func.func @transform_5(%arg0: i32, %arg1: i32) -> (i32, i32) {
    %c0_i32 = arith.constant 0 : i32
    %c0_i32_0 = arith.constant 0 : i32
    %c0_i32_1 = arith.constant 0 : i32
    return %c0_i32, %c0_i32_0 : i32, i32
  }
  func.func @transform_6(%arg0: i32, %arg1: i32) -> (i32, i32, i32) {
    %c0_i32 = arith.constant 0 : i32
    %c0_i32_0 = arith.constant 0 : i32
    %c0_i32_1 = arith.constant 0 : i32
    return %arg0, %c0_i32, %c0_i32_0 : i32, i32, i32
  }
}

</mosaic_0001>

<llo_original>
// kernel: tpu_custom_call.1
$region0: #{tpu_custom_call.1}
  #allocation0 [shape = 'u32[]', space=smem, size = 0x4, offset = 0x4, fixed_abs, tag = 'smem constant byte address 0x4 - core index']
  #allocation1 [shape = 'u32[144,128]{1,0:T(1,128)}', space=vmem, size = 0x12000, scoped, tag = 'internal scratch']
  #allocation2 [shape = 'f32[1,512]{1,0:T(1,128)}', space=vmem, size = 0x800, scoped, tag = 'scratch operand']
  #allocation3 [shape = 'f32[1]{0:T(128)S(6)}', space=smem, size = 0x200, scoped, tag = 'scoped memory for tpu_custom_call.1']
  %s0 = inlined_call_operand.<no memory space> [shape: f32[1], index: 0, kind: input, shape index: {}]
  %s1 = inlined_call_operand.vmem [shape: bf16[2,1,36,9,3], index: 1, kind: input, shape index: {}]
  %s2 = inlined_call_operand.vmem [shape: bf16[27,512], index: 2, kind: input, shape index: {}]
  %s3 = inlined_call_operand.vmem [shape: f32[1,512], index: 3, kind: input, shape index: {}]
  %s4 = inlined_call_operand.vmem [shape: f32[512,128], index: 4, kind: input, shape index: {}]
  %s5 = inlined_call_operand.vmem [shape: f32[1,128], index: 5, kind: input, shape index: {}]
  %s6 = inlined_call_operand.hbm [shape: f32[2,1,128], index: 6, kind: output, shape index: {}]
  %s7 = sld [smem:[#allocation0]]
  $region65: #{tpu_custom_call.1} parent=0
    _
  %s9 = ssub.s32 1, %s7
  %s10 = scalar_select 0, %s9, %s7
  %11 = sst [smem:[#allocation3]] %s0
  $region1: #{tpu_custom_call.1} parent=0
    #allocation4 [shape = 'u8[1024]{0}', space=vmem, size = 0x400, scoped, tag = 'output window, operand 0']
    #allocation5 [shape = 's32[2]{0}', space=sflag, size = 0x8, scoped, tag = 'scoped memory for tpu_custom_call.1']
    %12 = vsyncpa [#allocation5], 0
    %s13 = scalar_lea.sflag [#allocation5], 1
    %14 = vsyncpa %s13, 0
    loop: start=0, step=1, limit=4
    $region2: #{tpu_custom_call.1} parent=1 // loop_pre_header
      _
    $region3: #{tpu_custom_call.1} parent=1 // loop_header
      %s16 = sphi 0, %s20
      %p17 = scmp.ge.s32.totalorder %s16, 4
      %s23 = sphi 0, %s35
      %s24 = sphi 0, %s31
      %s25 = sphi 0, %s23
      %s26 = sphi 0, %s24
      %s27 = sphi 0, %s25
      %s28 = sphi 0, %s26
      %s36 = sphi 0, %s36
      %s38 = sphi 0, %s36
      %s39 = sphi 0, %s38
      %s53 = sphi 0, %s39
      %s61 = sphi 0, %s63
      %s64 = sphi 0, %s61
      %s65 = sphi 0, %s64
      %s81 = sphi 0, %s65
      %s85 = sphi 0, %s85
      %s87 = sphi 0, %s85
      %s88 = sphi 0, %s87
      %s102 = sphi 0, %s88
      %s106 = sphi 0, %s106
      %s108 = sphi 0, %s106
      %s109 = sphi 0, %s108
      %s123 = sphi 0, %s109
      %s127 = sphi 0, %s127
      %s129 = sphi 0, %s127
      %s130 = sphi 0, %s129
      %s144 = sphi 0, %s130
      %s148 = sphi 0, %s148
      %s150 = sphi 0, %s148
      %s151 = sphi 0, %s150
      %s165 = sphi 0, %s151
      %s171 = sphi 0, %s173
      %s174 = sphi 0, %s171
      %s175 = sphi 0, %s174
      %s191 = sphi 0, %s175
    $region4: #{tpu_custom_call.1} parent=1 // loop_header_branch
      %19 = sbr.rel (%p17) target = $region8
    $region5: #{tpu_custom_call.1} parent=1 // loop_body
      %s21 = ssub.s32 %s16, 1
      %s22 = ssub.s32 %s16, 2
      %s29 = sadd.s32 1, %s24
      %p30 = scmp.ge.s32.totalorder %s29, 1
      %s31 = scalar_select %p30, 0, %s29
      %s32 = sadd.s32 1, %s23
      %s33 = scalar_select %p30, %s32, %s23
      %p34 = scmp.ge.s32.totalorder %s33, 2
      %s35 = scalar_select %p34, 0, %s33
      %s37 = sadd.s32 %s36, 1
      %p40 = scmp.eq.s32.totalorder %s16, 1
      %p41 = scmp.ne.s32.totalorder %s36, %s38
      %p42 = scmp.eq.s32.totalorder %s16, 0
      %p43 = por %p41, %p42
      %p44 = scmp.ne.s32.totalorder %s36, %s38
      %p45 = scmp.eq.s32.totalorder %s21, 1
      %p46 = por %p44, %p45
      %p47 = scmp.ne.s32.totalorder %s38, %s39
      %p48 = scmp.eq.s32.totalorder %s21, 0
      %p49 = por %p47, %p48
      %p50 = scmp.ne.s32.totalorder %s38, %s39
      %p51 = scmp.eq.s32.totalorder %s22, 1
      %p52 = por %p50, %p51
      %p54 = scmp.ne.s32.totalorder %s39, %s53
      %p55 = scmp.eq.s32.totalorder %s22, 0
      %p56 = por %p54, %p55
      %s57 = ssub.s32 %s23, %s35
      %s58 = ssub.s32 %s24, %s31
      %s59 = sor.u32 %s57, %s58
      %p60 = scmp.eq.s32.totalorder %s59, 0
      %s62 = sadd.s32 %s61, 1
      %s63 = scalar_select %p60, %s61, %s62
      %p66 = pneg %p60
      %p67 = scmp.eq.s32.totalorder %s16, 1
      %p68 = por %p66, %p67
      %p69 = scmp.ne.s32.totalorder %s61, %s64
      %p70 = scmp.eq.s32.totalorder %s16, 0
      %p71 = por %p69, %p70
      %p72 = scmp.ne.s32.totalorder %s61, %s64
      %p73 = scmp.eq.s32.totalorder %s21, 1
      %p74 = por %p72, %p73
      %p75 = scmp.ne.s32.totalorder %s64, %s65
      %p76 = scmp.eq.s32.totalorder %s21, 0
      %p77 = por %p75, %p76
      %p78 = scmp.ne.s32.totalorder %s64, %s65
      %p79 = scmp.eq.s32.totalorder %s22, 1
      %p80 = por %p78, %p79
      %p82 = scmp.ne.s32.totalorder %s65, %s81
      %p83 = scmp.eq.s32.totalorder %s22, 0
      %p84 = por %p82, %p83
      %s86 = sadd.s32 %s85, 1
      %p89 = scmp.eq.s32.totalorder %s16, 1
      %p90 = scmp.ne.s32.totalorder %s85, %s87
      %p91 = scmp.eq.s32.totalorder %s16, 0
      %p92 = por %p90, %p91
      %p93 = scmp.ne.s32.totalorder %s85, %s87
      %p94 = scmp.eq.s32.totalorder %s21, 1
      %p95 = por %p93, %p94
      %p96 = scmp.ne.s32.totalorder %s87, %s88
      %p97 = scmp.eq.s32.totalorder %s21, 0
      %p98 = por %p96, %p97
      %p99 = scmp.ne.s32.totalorder %s87, %s88
      %p100 = scmp.eq.s32.totalorder %s22, 1
      %p101 = por %p99, %p100
      %p103 = scmp.ne.s32.totalorder %s88, %s102
      %p104 = scmp.eq.s32.totalorder %s22, 0
      %p105 = por %p103, %p104
      %s107 = sadd.s32 %s106, 1
      %p110 = scmp.eq.s32.totalorder %s16, 1
      %p111 = scmp.ne.s32.totalorder %s106, %s108
      %p112 = scmp.eq.s32.totalorder %s16, 0
      %p113 = por %p111, %p112
      %p114 = scmp.ne.s32.totalorder %s106, %s108
      %p115 = scmp.eq.s32.totalorder %s21, 1
      %p116 = por %p114, %p115
      %p117 = scmp.ne.s32.totalorder %s108, %s109
      %p118 = scmp.eq.s32.totalorder %s21, 0
      %p119 = por %p117, %p118
      %p120 = scmp.ne.s32.totalorder %s108, %s109
      %p121 = scmp.eq.s32.totalorder %s22, 1
      %p122 = por %p120, %p121
      %p124 = scmp.ne.s32.totalorder %s109, %s123
      %p125 = scmp.eq.s32.totalorder %s22, 0
      %p126 = por %p124, %p125
      %s128 = sadd.s32 %s127, 1
      %p131 = scmp.eq.s32.totalorder %s16, 1
      %p132 = scmp.ne.s32.totalorder %s127, %s129
      %p133 = scmp.eq.s32.totalorder %s16, 0
      %p134 = por %p132, %p133
      %p135 = scmp.ne.s32.totalorder %s127, %s129
      %p136 = scmp.eq.s32.totalorder %s21, 1
      %p137 = por %p135, %p136
      %p138 = scmp.ne.s32.totalorder %s129, %s130
      %p139 = scmp.eq.s32.totalorder %s21, 0
      %p140 = por %p138, %p139
      %p141 = scmp.ne.s32.totalorder %s129, %s130
      %p142 = scmp.eq.s32.totalorder %s22, 1
      %p143 = por %p141, %p142
      %p145 = scmp.ne.s32.totalorder %s130, %s144
      %p146 = scmp.eq.s32.totalorder %s22, 0
      %p147 = por %p145, %p146
      %s149 = sadd.s32 %s148, 1
      %p152 = scmp.eq.s32.totalorder %s16, 1
      %p153 = scmp.ne.s32.totalorder %s148, %s150
      %p154 = scmp.eq.s32.totalorder %s16, 0
      %p155 = por %p153, %p154
      %p156 = scmp.ne.s32.totalorder %s148, %s150
      %p157 = scmp.eq.s32.totalorder %s21, 1
      %p158 = por %p156, %p157
      %p159 = scmp.ne.s32.totalorder %s150, %s151
      %p160 = scmp.eq.s32.totalorder %s21, 0
      %p161 = por %p159, %p160
      %p162 = scmp.ne.s32.totalorder %s150, %s151
      %p163 = scmp.eq.s32.totalorder %s22, 1
      %p164 = por %p162, %p163
      %p166 = scmp.ne.s32.totalorder %s151, %s165
      %p167 = scmp.eq.s32.totalorder %s22, 0
      %p168 = por %p166, %p167
      %s169 = ssub.s32 %s23, %s35
      %p170 = scmp.eq.s32.totalorder %s169, 0
      %s172 = sadd.s32 %s171, 1
      %s173 = scalar_select %p170, %s171, %s172
      %p176 = pneg %p170
      %p177 = scmp.eq.s32.totalorder %s16, 1
      %p178 = por %p176, %p177
      %p179 = scmp.ne.s32.totalorder %s171, %s174
      %p180 = scmp.eq.s32.totalorder %s16, 0
      %p181 = por %p179, %p180
      %p182 = scmp.ne.s32.totalorder %s171, %s174
      %p183 = scmp.eq.s32.totalorder %s21, 1
      %p184 = por %p182, %p183
      %p185 = scmp.ne.s32.totalorder %s174, %s175
      %p186 = scmp.eq.s32.totalorder %s21, 0
      %p187 = por %p185, %p186
      %p188 = scmp.ne.s32.totalorder %s174, %s175
      %p189 = scmp.eq.s32.totalorder %s22, 1
      %p190 = por %p188, %p189
      %p192 = scmp.ne.s32.totalorder %s175, %s191
      %p193 = scmp.eq.s32.totalorder %s22, 0
      %p194 = por %p192, %p193
      %p195 = scmp.le.s32.totalorder 1, %s16
      %p196 = scmp.lt.s32.totalorder %s16, 3
      %p197 = pnand %p195, %p196
      %p198 = pneg %p197
      // Predicated region
      $region9: #{tpu_custom_call.1} parent=5 // pred_check
        _
      $region10: #{tpu_custom_call.1} parent=5 // pred_check_branch
        %200 = sbr.rel (%p197) target = $region12
      $region11: #{tpu_custom_call.1} parent=5 // pred_region
        %s201 = ssub.s32 %s16, 1
        // Predicated region
        $region13: #{tpu_custom_call.1} parent=11 // pred_check
          %p202 = pneg %p49
        $region14: #{tpu_custom_call.1} parent=11 // pred_check_branch
          %204 = sbr.rel (%p202) target = $region16
        $region15: #{tpu_custom_call.1} parent=11 // pred_region
          _
        $region16: #{tpu_custom_call.1} parent=11 // pred_fallthru
          _
        // Predicated region
        $region17: #{tpu_custom_call.1} parent=11 // pred_check
          %p205 = pneg %p98
        $region18: #{tpu_custom_call.1} parent=11 // pred_check_branch
          %207 = sbr.rel (%p205) target = $region20
        $region19: #{tpu_custom_call.1} parent=11 // pred_region
          _
        $region20: #{tpu_custom_call.1} parent=11 // pred_fallthru
          _
        // Predicated region
        $region21: #{tpu_custom_call.1} parent=11 // pred_check
          %p208 = pneg %p119
        $region22: #{tpu_custom_call.1} parent=11 // pred_check_branch
          %210 = sbr.rel (%p208) target = $region24
        $region23: #{tpu_custom_call.1} parent=11 // pred_region
          _
        $region24: #{tpu_custom_call.1} parent=11 // pred_fallthru
          _
        // Predicated region
        $region25: #{tpu_custom_call.1} parent=11 // pred_check
          %p211 = pneg %p140
        $region26: #{tpu_custom_call.1} parent=11 // pred_check_branch
          %213 = sbr.rel (%p211) target = $region28
        $region27: #{tpu_custom_call.1} parent=11 // pred_region
          _
        $region28: #{tpu_custom_call.1} parent=11 // pred_fallthru
          _
        // Predicated region
        $region29: #{tpu_custom_call.1} parent=11 // pred_check
          %p214 = pneg %p161
        $region30: #{tpu_custom_call.1} parent=11 // pred_check_branch
          %216 = sbr.rel (%p214) target = $region32
        $region31: #{tpu_custom_call.1} parent=11 // pred_region
          _
        $region32: #{tpu_custom_call.1} parent=11 // pred_fallthru
          _
      $region12: #{tpu_custom_call.1} parent=5 // pred_fallthru
        _
      %p217 = scmp.lt.s32.totalorder %s16, 2
      // Predicated region
      $region33: #{tpu_custom_call.1} parent=5 // pred_check
        %p218 = pneg %p217
      $region34: #{tpu_custom_call.1} parent=5 // pred_check_branch
        %220 = sbr.rel (%p218) target = $region36
      $region35: #{tpu_custom_call.1} parent=5 // pred_region
        // Predicated region
        $region37: #{tpu_custom_call.1} parent=35 // pred_check
          %p221 = pneg %p71
        $region38: #{tpu_custom_call.1} parent=35 // pred_check_branch
          %223 = sbr.rel (%p221) target = $region40
        $region39: #{tpu_custom_call.1} parent=35 // pred_region
          %p224 = scmp.lt.s32.totalorder %s23, 1
          %s225 = scalar_select %p224, %s23, 1
          %p226 = scmp.lt.s32.totalorder %s24, 0
          %s227 = scalar_select %p226, %s24, 0
          %s228 = smul.addr %s227, 72
          %s229 = smul.addr %s225, 72
          %s230 = sadd.s32 %s228, %s229
          %s231 = smul.addr %s230, 4
          %s232 = scalar_lea.vmem %s1, %s231
        $region40: #{tpu_custom_call.1} parent=35 // pred_fallthru
          _
      $region36: #{tpu_custom_call.1} parent=5 // pred_fallthru
        _
      %p233 = scmp.le.s32.totalorder 1, %s16
      %p234 = scmp.lt.s32.totalorder %s16, 3
      %p235 = pnand %p233, %p234
      %p236 = pneg %p235
      // Predicated region
      $region41: #{tpu_custom_call.1} parent=5 // pred_check
        _
      $region42: #{tpu_custom_call.1} parent=5 // pred_check_branch
        %238 = sbr.rel (%p235) target = $region44
      $region43: #{tpu_custom_call.1} parent=5 // pred_region
        %s239 = ssub.s32 %s16, 1
        %p240 = pneg %p49
        %p241 = pneg %p46
        %p242 = scmp.lt.s32.totalorder %s25, 1
        %s243 = scalar_select %p242, %s25, 1
        %p244 = scmp.lt.s32.totalorder %s26, 0
        %s245 = scalar_select %p244, %s26, 0
        %s246 = smul.addr %s245, 72
        %s247 = smul.addr %s243, 72
        %s248 = sadd.s32 %s246, %s247
        %s249 = smul.addr %s248, 4
        %s250 = scalar_lea.vmem %s1, %s249
        %p251 = pneg %p77
        %p252 = pneg %p74
        %p253 = pneg %p98
        %p254 = pneg %p95
        %p255 = pneg %p119
        %p256 = pneg %p116
        %p257 = pneg %p140
        %p258 = pneg %p137
        %p259 = pneg %p161
        %p260 = pneg %p158
        %p261 = pneg %p187
        %p262 = pneg %p184
        %s263 = sand.u32 %s174, 1
        %s264 = scalar_lea.sflag [#allocation5], %s263
        %s265 = sand.u32 %s174, 1
        %s266 = scalar_lea.vmem [#allocation4], %s265
        %p267 = scmp.lt.s32.totalorder %s25, 1
        %s268 = scalar_select %p267, %s25, 1
        %p269 = scmp.lt.s32.totalorder %s26, 0
        %s270 = scalar_select %p269, %s26, 0
        %s271 = smul.addr %s270, 72
        %s272 = smul.addr %s268, 72
        %s273 = sadd.s32 %s271, %s272
        %s274 = smul.addr %s273, 4
        %s275 = scalar_lea.vmem %s1, %s274
        %p277 = scmp.eq.s32.totalorder %s26, 0
        // Predicated region
        $region45: #{tpu_custom_call.1} parent=43 // pred_check
          %p278 = pneg %p277
        $region46: #{tpu_custom_call.1} parent=43 // pred_check_branch
          %280 = sbr.rel (%p278) target = $region48
        $region47: #{tpu_custom_call.1} parent=43 // pred_region
          %v281 = vlaneseq
          %vm282 = vcmp.ge.s32.totalorder %v281, 0
          %vm283 = vcmp.lt.s32.totalorder %v281, 512
          %vm284 = vmand %vm282, %vm283
          %285 = vst.msk [vmem:[#allocation2] sm:$0xf] %vm284, 0.0
        $region48: #{tpu_custom_call.1} parent=43 // pred_fallthru
          _
        %v286 = vld [vmem:[%s275] sm:$0xf]
        %v287 = vld [vmem:[%s275 + $0x4] sm:$0x1]
        %v288 = vld [vmem:[%s275 + $0x8] sm:$0xf]
        %v289 = vld [vmem:[%s275 + $0xc] sm:$0x1]
        %v290 = vld [vmem:[%s275 + $0x10] sm:$0xf]
        %v291 = vld [vmem:[%s275 + $0x14] sm:$0x1]
        %v292 = vld [vmem:[%s275 + $0x18] sm:$0xf]
        %v293 = vld [vmem:[%s275 + $0x1c] sm:$0x1]
        %v294 = vld [vmem:[%s275 + $0x20] sm:$0xf]
        %v295 = vld [vmem:[%s275 + $0x24] sm:$0x1]
        %v296 = vld [vmem:[%s275 + $0x28] sm:$0xf]
        %v297 = vld [vmem:[%s275 + $0x2c] sm:$0x1]
        %v298 = vld [vmem:[%s275 + $0x30] sm:$0xf]
        %v299 = vld [vmem:[%s275 + $0x34] sm:$0x1]
        %v300 = vld [vmem:[%s275 + $0x38] sm:$0xf]
        %v301 = vld [vmem:[%s275 + $0x3c] sm:$0x1]
        %v302 = vld [vmem:[%s275 + $0x40] sm:$0xf]
        %v303 = vld [vmem:[%s275 + $0x44] sm:$0x1]
        %v304 = vld [vmem:[%s275 + $0x48] sm:$0xf]
        %v305 = vld [vmem:[%s275 + $0x50] sm:$0xf]
        %v306 = vld [vmem:[%s275 + $0x58] sm:$0xf]
        %v307 = vld [vmem:[%s275 + $0x60] sm:$0xf]
        %v308 = vld [vmem:[%s275 + $0x68] sm:$0xf]
        %v309 = vld [vmem:[%s275 + $0x70] sm:$0xf]
        %v310 = vld [vmem:[%s275 + $0x78] sm:$0xf]
        %v311 = vld [vmem:[%s275 + $0x80] sm:$0xf]
        %v312 = vld [vmem:[%s275 + $0x88] sm:$0xf]
        %v313 = vld [vmem:[%s275 + $0x90] sm:$0xf]
        %v314 = vld [vmem:[%s275 + $0x94] sm:$0x1]
        %v315 = vld [vmem:[%s275 + $0x98] sm:$0xf]
        %v316 = vld [vmem:[%s275 + $0x9c] sm:$0x1]
        %v317 = vld [vmem:[%s275 + $0xa0] sm:$0xf]
        %v318 = vld [vmem:[%s275 + $0xa4] sm:$0x1]
        %v319 = vld [vmem:[%s275 + $0xa8] sm:$0xf]
        %v320 = vld [vmem:[%s275 + $0xac] sm:$0x1]
        %v321 = vld [vmem:[%s275 + $0xb0] sm:$0xf]
        %v322 = vld [vmem:[%s275 + $0xb4] sm:$0x1]
        %v323 = vld [vmem:[%s275 + $0xb8] sm:$0xf]
        %v324 = vld [vmem:[%s275 + $0xbc] sm:$0x1]
        %v325 = vld [vmem:[%s275 + $0xc0] sm:$0xf]
        %v326 = vld [vmem:[%s275 + $0xc4] sm:$0x1]
        %v327 = vld [vmem:[%s275 + $0xc8] sm:$0xf]
        %v328 = vld [vmem:[%s275 + $0xcc] sm:$0x1]
        %v329 = vld [vmem:[%s275 + $0xd8] sm:$0xf]
        %v330 = vld [vmem:[%s275 + $0xe0] sm:$0xf]
        %v331 = vld [vmem:[%s275 + $0xe8] sm:$0xf]
        %v332 = vld [vmem:[%s275 + $0xf0] sm:$0xf]
        %v333 = vld [vmem:[%s275 + $0xf8] sm:$0xf]
        %v334 = vld [vmem:[%s275 + $0x100] sm:$0xf]
        %v335 = vld [vmem:[%s275 + $0x108] sm:$0xf]
        %v336 = vld [vmem:[%s275 + $0x110] sm:$0xf]
        %v337 = vunpack.c.l.bf16 %v286
        %v338 = vunpack.c.l.bf16 %v287
        %v339 = vunpack.c.l.bf16 %v288
        %v340 = vunpack.c.l.bf16 %v289
        %v341 = vunpack.c.l.bf16 %v290
        %v342 = vunpack.c.l.bf16 %v291
        %v343 = vunpack.c.l.bf16 %v292
        %v344 = vunpack.c.l.bf16 %v293
        %v345 = vunpack.c.l.bf16 %v294
        %v346 = vunpack.c.l.bf16 %v295
        %v347 = vunpack.c.l.bf16 %v296
        %v348 = vunpack.c.l.bf16 %v297
        %v349 = vunpack.c.l.bf16 %v298
        %v350 = vunpack.c.l.bf16 %v299
        %v351 = vunpack.c.l.bf16 %v300
        %v352 = vunpack.c.l.bf16 %v301
        %v353 = vunpack.c.l.bf16 %v302
        %v354 = vunpack.c.l.bf16 %v303
        %v355 = vunpack.c.l.bf16 %v304
        %v356 = vunpack.c.l.bf16 %v305
        %v357 = vunpack.c.l.bf16 %v306
        %v358 = vunpack.c.l.bf16 %v307
        %v359 = vunpack.c.l.bf16 %v308
        %v360 = vunpack.c.l.bf16 %v309
        %v361 = vunpack.c.l.bf16 %v310
        %v362 = vunpack.c.l.bf16 %v311
        %v363 = vunpack.c.l.bf16 %v312
        %v364 = vunpack.c.l.bf16 %v313
        %v365 = vunpack.c.l.bf16 %v314
        %v366 = vunpack.c.l.bf16 %v315
        %v367 = vunpack.c.l.bf16 %v316
        %v368 = vunpack.c.l.bf16 %v317
        %v369 = vunpack.c.l.bf16 %v318
        %v370 = vunpack.c.l.bf16 %v319
        %v371 = vunpack.c.l.bf16 %v320
        %v372 = vunpack.c.l.bf16 %v321
        %v373 = vunpack.c.l.bf16 %v322
        %v374 = vunpack.c.l.bf16 %v323
        %v375 = vunpack.c.l.bf16 %v324
        %v376 = vunpack.c.l.bf16 %v325
        %v377 = vunpack.c.l.bf16 %v326
        %v378 = vunpack.c.l.bf16 %v327
        %v379 = vunpack.c.l.bf16 %v328
        %v380 = vunpack.c.l.bf16 %v329
        %v381 = vunpack.c.l.bf16 %v330
        %v382 = vunpack.c.l.bf16 %v331
        %v383 = vunpack.c.l.bf16 %v332
        %v384 = vunpack.c.l.bf16 %v333
        %v385 = vunpack.c.l.bf16 %v334
        %v386 = vunpack.c.l.bf16 %v335
        %v387 = vunpack.c.l.bf16 %v336
        %396 = vrot.lane.b32.xlu0 %v355, 3
        %v397 = vpop.permute.xlu0 %396
        %398 = vrot.lane.b32.xlu0 %v356, 3
        %v399 = vpop.permute.xlu0 %398
        %400 = vrot.lane.b32.xlu0 %v357, 3
        %v401 = vpop.permute.xlu0 %400
        %402 = vrot.lane.b32.xlu0 %v358, 3
        %v403 = vpop.permute.xlu0 %402
        %404 = vrot.lane.b32.xlu0 %v359, 3
        %v405 = vpop.permute.xlu0 %404
        %406 = vrot.lane.b32.xlu0 %v360, 3
        %v407 = vpop.permute.xlu0 %406
        %408 = vrot.lane.b32.xlu0 %v361, 3
        %v409 = vpop.permute.xlu0 %408
        %410 = vrot.lane.b32.xlu0 %v362, 3
        %v411 = vpop.permute.xlu0 %410
        %vm436 = vcmask 1046528
        %v437 = vrot.slane %v337, 1
        %v438 = vrot.slane %v338, 1
        %v439 = vsel %vm436, %v437, %v438
        %v440 = vrot.slane %v339, 1
        %v441 = vrot.slane %v340, 1
        %v442 = vsel %vm436, %v440, %v441
        %v443 = vrot.slane %v341, 1
        %v444 = vrot.slane %v342, 1
        %v445 = vsel %vm436, %v443, %v444
        %v446 = vrot.slane %v343, 1
        %v447 = vrot.slane %v344, 1
        %v448 = vsel %vm436, %v446, %v447
        %v449 = vrot.slane %v345, 1
        %v450 = vrot.slane %v346, 1
        %v451 = vsel %vm436, %v449, %v450
        %v452 = vrot.slane %v347, 1
        %v453 = vrot.slane %v348, 1
        %v454 = vsel %vm436, %v452, %v453
        %v455 = vrot.slane %v349, 1
        %v456 = vrot.slane %v350, 1
        %v457 = vsel %vm436, %v455, %v456
        %v458 = vrot.slane %v351, 1
        %v459 = vrot.slane %v352, 1
        %v460 = vsel %vm436, %v458, %v459
        %461 = vrot.lane.b32.xlu0 %v439, 6
        %v462 = vpop.permute.xlu0 %461
        %463 = vrot.lane.b32.xlu0 %v442, 6
        %v464 = vpop.permute.xlu0 %463
        %465 = vrot.lane.b32.xlu0 %v445, 6
        %v466 = vpop.permute.xlu0 %465
        %467 = vrot.lane.b32.xlu0 %v448, 6
        %v468 = vpop.permute.xlu0 %467
        %469 = vrot.lane.b32.xlu0 %v451, 6
        %v470 = vpop.permute.xlu0 %469
        %471 = vrot.lane.b32.xlu0 %v454, 6
        %v472 = vpop.permute.xlu0 %471
        %473 = vrot.lane.b32.xlu0 %v457, 6
        %v474 = vpop.permute.xlu0 %473
        %475 = vrot.lane.b32.xlu0 %v460, 6
        %v476 = vpop.permute.xlu0 %475
        %493 = vrot.lane.b32.xlu0 %v364, 9
        %v494 = vpop.permute.xlu0 %493
        %495 = vrot.lane.b32.xlu0 %v366, 9
        %v496 = vpop.permute.xlu0 %495
        %497 = vrot.lane.b32.xlu0 %v368, 9
        %v498 = vpop.permute.xlu0 %497
        %499 = vrot.lane.b32.xlu0 %v370, 9
        %v500 = vpop.permute.xlu0 %499
        %501 = vrot.lane.b32.xlu0 %v372, 9
        %v502 = vpop.permute.xlu0 %501
        %503 = vrot.lane.b32.xlu0 %v374, 9
        %v504 = vpop.permute.xlu0 %503
        %505 = vrot.lane.b32.xlu0 %v376, 9
        %v506 = vpop.permute.xlu0 %505
        %507 = vrot.lane.b32.xlu0 %v378, 9
        %v508 = vpop.permute.xlu0 %507
        %525 = vrot.lane.b32.xlu0 %v380, 12
        %v526 = vpop.permute.xlu0 %525
        %527 = vrot.lane.b32.xlu0 %v381, 12
        %v528 = vpop.permute.xlu0 %527
        %529 = vrot.lane.b32.xlu0 %v382, 12
        %v530 = vpop.permute.xlu0 %529
        %531 = vrot.lane.b32.xlu0 %v383, 12
        %v532 = vpop.permute.xlu0 %531
        %533 = vrot.lane.b32.xlu0 %v384, 12
        %v534 = vpop.permute.xlu0 %533
        %535 = vrot.lane.b32.xlu0 %v385, 12
        %v536 = vpop.permute.xlu0 %535
        %537 = vrot.lane.b32.xlu0 %v386, 12
        %v538 = vpop.permute.xlu0 %537
        %539 = vrot.lane.b32.xlu0 %v387, 12
        %v540 = vpop.permute.xlu0 %539
        %v557 = vrot.slane %v364, 1
        %v558 = vrot.slane %v365, 1
        %v559 = vsel %vm436, %v557, %v558
        %v560 = vrot.slane %v366, 1
        %v561 = vrot.slane %v367, 1
        %v562 = vsel %vm436, %v560, %v561
        %v563 = vrot.slane %v368, 1
        %v564 = vrot.slane %v369, 1
        %v565 = vsel %vm436, %v563, %v564
        %v566 = vrot.slane %v370, 1
        %v567 = vrot.slane %v371, 1
        %v568 = vsel %vm436, %v566, %v567
        %v569 = vrot.slane %v372, 1
        %v570 = vrot.slane %v373, 1
        %v571 = vsel %vm436, %v569, %v570
        %v572 = vrot.slane %v374, 1
        %v573 = vrot.slane %v375, 1
        %v574 = vsel %vm436, %v572, %v573
        %v575 = vrot.slane %v376, 1
        %v576 = vrot.slane %v377, 1
        %v577 = vsel %vm436, %v575, %v576
        %v578 = vrot.slane %v378, 1
        %v579 = vrot.slane %v379, 1
        %v580 = vsel %vm436, %v578, %v579
        %581 = vrot.lane.b32.xlu0 %v559, 15
        %v582 = vpop.permute.xlu0 %581
        %583 = vrot.lane.b32.xlu0 %v562, 15
        %v584 = vpop.permute.xlu0 %583
        %585 = vrot.lane.b32.xlu0 %v565, 15
        %v586 = vpop.permute.xlu0 %585
        %587 = vrot.lane.b32.xlu0 %v568, 15
        %v588 = vpop.permute.xlu0 %587
        %589 = vrot.lane.b32.xlu0 %v571, 15
        %v590 = vpop.permute.xlu0 %589
        %591 = vrot.lane.b32.xlu0 %v574, 15
        %v592 = vpop.permute.xlu0 %591
        %593 = vrot.lane.b32.xlu0 %v577, 15
        %v594 = vpop.permute.xlu0 %593
        %595 = vrot.lane.b32.xlu0 %v580, 15
        %v596 = vpop.permute.xlu0 %595
        %606 = vrot.lane.b32.xlu0 %v339, 18
        %v607 = vpop.permute.xlu0 %606
        %608 = vrot.lane.b32.xlu0 %v341, 18
        %v609 = vpop.permute.xlu0 %608
        %610 = vrot.lane.b32.xlu0 %v343, 18
        %v611 = vpop.permute.xlu0 %610
        %612 = vrot.lane.b32.xlu0 %v345, 18
        %v613 = vpop.permute.xlu0 %612
        %614 = vrot.lane.b32.xlu0 %v347, 18
        %v615 = vpop.permute.xlu0 %614
        %616 = vrot.lane.b32.xlu0 %v349, 18
        %v617 = vpop.permute.xlu0 %616
        %618 = vrot.lane.b32.xlu0 %v351, 18
        %v619 = vpop.permute.xlu0 %618
        %620 = vrot.lane.b32.xlu0 %v353, 18
        %v621 = vpop.permute.xlu0 %620
        %631 = vrot.lane.b32.xlu0 %v356, 21
        %v632 = vpop.permute.xlu0 %631
        %633 = vrot.lane.b32.xlu0 %v357, 21
        %v634 = vpop.permute.xlu0 %633
        %635 = vrot.lane.b32.xlu0 %v358, 21
        %v636 = vpop.permute.xlu0 %635
        %637 = vrot.lane.b32.xlu0 %v359, 21
        %v638 = vpop.permute.xlu0 %637
        %639 = vrot.lane.b32.xlu0 %v360, 21
        %v640 = vpop.permute.xlu0 %639
        %641 = vrot.lane.b32.xlu0 %v361, 21
        %v642 = vpop.permute.xlu0 %641
        %643 = vrot.lane.b32.xlu0 %v362, 21
        %v644 = vpop.permute.xlu0 %643
        %645 = vrot.lane.b32.xlu0 %v363, 21
        %v646 = vpop.permute.xlu0 %645
        %v656 = vrot.slane %v353, 1
        %v657 = vrot.slane %v354, 1
        %v658 = vsel %vm436, %v656, %v657
        %659 = vrot.lane.b32.xlu0 %v442, 24
        %v660 = vpop.permute.xlu0 %659
        %661 = vrot.lane.b32.xlu0 %v445, 24
        %v662 = vpop.permute.xlu0 %661
        %663 = vrot.lane.b32.xlu0 %v448, 24
        %v664 = vpop.permute.xlu0 %663
        %665 = vrot.lane.b32.xlu0 %v451, 24
        %v666 = vpop.permute.xlu0 %665
        %667 = vrot.lane.b32.xlu0 %v454, 24
        %v668 = vpop.permute.xlu0 %667
        %669 = vrot.lane.b32.xlu0 %v457, 24
        %v670 = vpop.permute.xlu0 %669
        %671 = vrot.lane.b32.xlu0 %v460, 24
        %v672 = vpop.permute.xlu0 %671
        %673 = vrot.lane.b32.xlu0 %v658, 24
        %v674 = vpop.permute.xlu0 %673
        %vm683 = vcmask 23552
        %v684 = vsel %vm683, %v337, %v397
        %v685 = vsel %vm683, %v339, %v399
        %v686 = vsel %vm683, %v341, %v401
        %v687 = vsel %vm683, %v343, %v403
        %v688 = vsel %vm683, %v345, %v405
        %v689 = vsel %vm683, %v347, %v407
        %v690 = vsel %vm683, %v349, %v409
        %v691 = vsel %vm683, %v351, %v411
        %vm692 = vcmask 48128
        %v693 = vsel %vm692, %v684, %v462
        %v694 = vsel %vm692, %v685, %v464
        %v695 = vsel %vm692, %v686, %v466
        %v696 = vsel %vm692, %v687, %v468
        %v697 = vsel %vm692, %v688, %v470
        %v698 = vsel %vm692, %v689, %v472
        %v699 = vsel %vm692, %v690, %v474
        %v700 = vsel %vm692, %v691, %v476
        %vm701 = vcmask 72704
        %v702 = vsel %vm701, %v693, %v494
        %v703 = vsel %vm701, %v694, %v496
        %v704 = vsel %vm701, %v695, %v498
        %v705 = vsel %vm701, %v696, %v500
        %v706 = vsel %vm701, %v697, %v502
        %v707 = vsel %vm701, %v698, %v504
        %v708 = vsel %vm701, %v699, %v506
        %v709 = vsel %vm701, %v700, %v508
        %vm710 = vcmask 97280
        %v711 = vsel %vm710, %v702, %v526
        %v712 = vsel %vm710, %v703, %v528
        %v713 = vsel %vm710, %v704, %v530
        %v714 = vsel %vm710, %v705, %v532
        %v715 = vsel %vm710, %v706, %v534
        %v716 = vsel %vm710, %v707, %v536
        %v717 = vsel %vm710, %v708, %v538
        %v718 = vsel %vm710, %v709, %v540
        %vm719 = vcmask 121856
        %v720 = vsel %vm719, %v711, %v582
        %v721 = vsel %vm719, %v712, %v584
        %v722 = vsel %vm719, %v713, %v586
        %v723 = vsel %vm719, %v714, %v588
        %v724 = vsel %vm719, %v715, %v590
        %v725 = vsel %vm719, %v716, %v592
        %v726 = vsel %vm719, %v717, %v594
        %v727 = vsel %vm719, %v718, %v596
        %vm728 = vcmask 146432
        %v729 = vsel %vm728, %v720, %v607
        %v730 = vsel %vm728, %v721, %v609
        %v731 = vsel %vm728, %v722, %v611
        %v732 = vsel %vm728, %v723, %v613
        %v733 = vsel %vm728, %v724, %v615
        %v734 = vsel %vm728, %v725, %v617
        %v735 = vsel %vm728, %v726, %v619
        %v736 = vsel %vm728, %v727, %v621
        %vm737 = vcmask 171008
        %v738 = vsel %vm737, %v729, %v632
        %v739 = vsel %vm737, %v730, %v634
        %v740 = vsel %vm737, %v731, %v636
        %v741 = vsel %vm737, %v732, %v638
        %v742 = vsel %vm737, %v733, %v640
        %v743 = vsel %vm737, %v734, %v642
        %v744 = vsel %vm737, %v735, %v644
        %v745 = vsel %vm737, %v736, %v646
        %vm746 = vcmask 195584
        %v747 = vsel %vm746, %v738, %v660
        %v748 = vsel %vm746, %v739, %v662
        %v749 = vsel %vm746, %v740, %v664
        %v750 = vsel %vm746, %v741, %v666
        %v751 = vsel %vm746, %v742, %v668
        %v752 = vsel %vm746, %v743, %v670
        %v753 = vsel %vm746, %v744, %v672
        %v754 = vsel %vm746, %v745, %v674
        %v755 = vpack.c.bf16 %v748, %v747
        %v756 = vpack.c.bf16 %v750, %v749
        %v757 = vpack.c.bf16 %v752, %v751
        %v758 = vpack.c.bf16 %v754, %v753
        %v759 = vld [vmem:[%s2] sm:$0xff]
        %v760 = vld [vmem:[%s2 + $0x8] sm:$0xff]
        %v761 = vld [vmem:[%s2 + $0x10] sm:$0xff]
        %v762 = vld [vmem:[%s2 + $0x18] sm:$0xff]
        %v763 = vld [vmem:[%s2 + $0x20] sm:$0xff]
        %v764 = vld [vmem:[%s2 + $0x28] sm:$0xff]
        %v765 = vld [vmem:[%s2 + $0x30] sm:$0x33]
        %v766 = vld [vmem:[%s2 + $0x38] sm:$0x33]
        %v767 = vld [vmem:[%s3] sm:$0xf]
        %v769 = vlaneseq
        %v770 = vshrl.u32 %v769, 7
        %v771 = vsub.s32 0, %v770
        %v772 = vrot.slane %v767, %v771
        %v773 = vlaneseq
        %v774 = vshrl.u32 %v773, 7
        %v775 = vsub.s32 1, %v774
        %v776 = vrot.slane %v767, %v775
        %v777 = vlaneseq
        %v778 = vshrl.u32 %v777, 7
        %v779 = vsub.s32 2, %v778
        %v780 = vrot.slane %v767, %v779
        %v781 = vlaneseq
        %v782 = vshrl.u32 %v781, 7
        %v783 = vsub.s32 3, %v782
        %v784 = vrot.slane %v767, %v783
        %v797 = vunpack.c.l.b16 %v759
        %v798 = vunpack.c.h.b16 %v759
        %v799 = vunpack.c.l.b16 %v760
        %v800 = vunpack.c.h.b16 %v760
        %v801 = vunpack.c.l.b16 %v761
        %v802 = vunpack.c.h.b16 %v761
        %v803 = vunpack.c.l.b16 %v762
        %v804 = vunpack.c.h.b16 %v762
        %v805 = vunpack.c.l.b16 %v763
        %v806 = vunpack.c.h.b16 %v763
        %v807 = vunpack.c.l.b16 %v764
        %v808 = vunpack.c.h.b16 %v764
        %v809 = vunpack.c.l.b16 %v765
        %v810 = vunpack.c.h.b16 %v765
        %v811 = vunpack.c.l.b16 %v766
        %v812 = vunpack.c.h.b16 %v766
        %v813 = vpack.c.b16 %v801, %v797
        %v814 = vpack.c.b16 %v802, %v798
        %v815 = vpack.c.b16 %v803, %v799
        %v816 = vpack.c.b16 %v804, %v800
        %v817 = vpack.c.b16 %v809, %v805
        %v818 = vpack.c.b16 %v810, %v806
        %v819 = vpack.c.b16 %v811, %v807
        %v820 = vpack.c.b16 %v812, %v808
        %vm825 = vcmask 220160
        %v827 = vsel %vm825, %v755, 0
        %v830 = vsel %vm825, %v756, 0
        %v833 = vsel %vm825, %v757, 0
        %v836 = vsel %vm825, %v758, 0
        %vm838 = vcmask 1044480
        %vm839 = vcmask 1045504
        %v840 = vsel %vm838, 4294967295, 65535
        %v841 = vsel %vm839, %v840, 0
        %v843 = vand.u32 %v817, %v841
        %v846 = vand.u32 %v818, %v841
        %v849 = vand.u32 %v819, %v841
        %v852 = vand.u32 %v820, %v841
        %854 = vmatprep.subr.bf16.mxu0 %v814
        %855 = vmatpush1.bf16.msra.mxu0 %v813
        %856 = vmatprep.subr.bf16.mxu0 %v846
        %857 = vmatpush1.bf16.msra.mxu0 %v843
        %858 = vmatprep.subr.bf16.mxu0 0
        %859 = vmatpush1.bf16.msra.mxu0 0
        %860 = vmatprep.subr.bf16.mxu0 0
        %861 = vmatpush1.bf16.msra.mxu0 0
        %862 = vmatprep.subr.bf16.mxu0 0
        %863 = vmatpush1.bf16.msra.mxu0 0
        %864 = vmatprep.subr.bf16.mxu0 0
        %865 = vmatpush1.bf16.msra.mxu0 0
        %866 = vmatprep.subr.bf16.mxu0 0
        %867 = vmatpush1.bf16.msra.mxu0 0
        %868 = vmatprep.subr.bf16.mxu0 0
        %869 = vmatpush1.bf16.msra.mxu0 0
        %870 = vmatprep.subr.bf16.mxu0 0
        %871 = vmatpush1.bf16.msra.mxu0 0
        %872 = vmatprep.subr.bf16.mxu0 0
        %873 = vmatpush1.bf16.msra.mxu0 0
        %874 = vmatprep.subr.bf16.mxu0 0
        %875 = vmatpush1.bf16.msra.mxu0 0
        %876 = vmatprep.subr.bf16.mxu0 0
        %877 = vmatpush1.bf16.msra.mxu0 0
        %878 = vmatprep.subr.bf16.mxu0 0
        %879 = vmatpush1.bf16.msra.mxu0 0
        %880 = vmatprep.subr.bf16.mxu0 0
        %881 = vmatpush1.bf16.msra.mxu0 0
        %882 = vmatprep.subr.bf16.mxu0 0
        %883 = vmatpush1.bf16.msra.mxu0 0
        %884 = vmatprep.subr.bf16.mxu0 0
        %885 = vmatpush1.bf16.msra.mxu0 0
        %886 = vmatprep.mubr.bf16.mxu0 0
        %887 = vmatmul.mubr.bf16.gmra.mrb[0].mxu0 %v827
        %v888 = vpop.f32.mrb[0].mxu0
        %v889 = vadd.f32 %v772, %v888
        %v890 = vpop.f32.mrb[0].mxu0
        %v891 = vadd.f32 %v776, %v890
        %v892 = vpop.f32.mrb[0].mxu0
        %v893 = vadd.f32 %v772, %v892
        %v894 = vpop.f32.mrb[0].mxu0
        %v895 = vadd.f32 %v776, %v894
        %896 = vmatprep.mubr.bf16.mxu0 0
        %897 = vmatmul.mubr.bf16.gmra.mrb[0].mxu0 %v830
        %v898 = vpop.f32.mrb[0].mxu0
        %v899 = vadd.f32 %v772, %v898
        %v900 = vpop.f32.mrb[0].mxu0
        %v901 = vadd.f32 %v776, %v900
        %v902 = vpop.f32.mrb[0].mxu0
        %v903 = vadd.f32 %v772, %v902
        %v904 = vpop.f32.mrb[0].mxu0
        %v905 = vadd.f32 %v776, %v904
        %906 = vmatprep.mubr.bf16.mxu0 0
        %907 = vmatmul.mubr.bf16.gmra.mrb[0].mxu0 %v833
        %v908 = vpop.f32.mrb[0].mxu0
        %v909 = vadd.f32 %v772, %v908
        %v910 = vpop.f32.mrb[0].mxu0
        %v911 = vadd.f32 %v776, %v910
        %v912 = vpop.f32.mrb[0].mxu0
        %v913 = vadd.f32 %v772, %v912
        %v914 = vpop.f32.mrb[0].mxu0
        %v915 = vadd.f32 %v776, %v914
        %916 = vmatprep.mubr.bf16.mxu0 0
        %917 = vmatmul.mubr.bf16.gmra.mrb[0].mxu0 %v836
        %v918 = vpop.f32.mrb[0].mxu0
        %v919 = vadd.f32 %v772, %v918
        %v920 = vpop.f32.mrb[0].mxu0
        %v921 = vadd.f32 %v776, %v920
        %v922 = vpop.f32.mrb[0].mxu0
        %v923 = vadd.f32 %v772, %v922
        %v924 = vpop.f32.mrb[0].mxu0
        %v925 = vadd.f32 %v776, %v924
        %926 = vdwg.mxu0
        %927 = vmatprep.subr.bf16.mxu0 %v816
        %928 = vmatpush1.bf16.msra.mxu0 %v815
        %929 = vmatprep.subr.bf16.mxu0 %v852
        %930 = vmatpush1.bf16.msra.mxu0 %v849
        %931 = vmatprep.subr.bf16.mxu0 0
        %932 = vmatpush1.bf16.msra.mxu0 0
        %933 = vmatprep.subr.bf16.mxu0 0
        %934 = vmatpush1.bf16.msra.mxu0 0
        %935 = vmatprep.subr.bf16.mxu0 0
        %936 = vmatpush1.bf16.msra.mxu0 0
        %937 = vmatprep.subr.bf16.mxu0 0
        %938 = vmatpush1.bf16.msra.mxu0 0
        %939 = vmatprep.subr.bf16.mxu0 0
        %940 = vmatpush1.bf16.msra.mxu0 0
        %941 = vmatprep.subr.bf16.mxu0 0
        %942 = vmatpush1.bf16.msra.mxu0 0
        %943 = vmatprep.subr.bf16.mxu0 0
        %944 = vmatpush1.bf16.msra.mxu0 0
        %945 = vmatprep.subr.bf16.mxu0 0
        %946 = vmatpush1.bf16.msra.mxu0 0
        %947 = vmatprep.subr.bf16.mxu0 0
        %948 = vmatpush1.bf16.msra.mxu0 0
        %949 = vmatprep.subr.bf16.mxu0 0
        %950 = vmatpush1.bf16.msra.mxu0 0
        %951 = vmatprep.subr.bf16.mxu0 0
        %952 = vmatpush1.bf16.msra.mxu0 0
        %953 = vmatprep.subr.bf16.mxu0 0
        %954 = vmatpush1.bf16.msra.mxu0 0
        %955 = vmatprep.subr.bf16.mxu0 0
        %956 = vmatpush1.bf16.msra.mxu0 0
        %957 = vmatprep.subr.bf16.mxu0 0
        %958 = vmatpush1.bf16.msra.mxu0 0
        %959 = vmatprep.mubr.bf16.mxu0 0
        %960 = vmatmul.mubr.bf16.gmra.mrb[0].mxu0 %v827
        %v961 = vpop.f32.mrb[0].mxu0
        %v962 = vadd.f32 %v780, %v961
        %v963 = vpop.f32.mrb[0].mxu0
        %v964 = vadd.f32 %v784, %v963
        %v965 = vpop.f32.mrb[0].mxu0
        %v966 = vadd.f32 %v780, %v965
        %v967 = vpop.f32.mrb[0].mxu0
        %v968 = vadd.f32 %v784, %v967
        %969 = vmatprep.mubr.bf16.mxu0 0
        %970 = vmatmul.mubr.bf16.gmra.mrb[0].mxu0 %v830
        %v971 = vpop.f32.mrb[0].mxu0
        %v972 = vadd.f32 %v780, %v971
        %v973 = vpop.f32.mrb[0].mxu0
        %v974 = vadd.f32 %v784, %v973
        %v975 = vpop.f32.mrb[0].mxu0
        %v976 = vadd.f32 %v780, %v975
        %v977 = vpop.f32.mrb[0].mxu0
        %v978 = vadd.f32 %v784, %v977
        %979 = vmatprep.mubr.bf16.mxu0 0
        %980 = vmatmul.mubr.bf16.gmra.mrb[0].mxu0 %v833
        %v981 = vpop.f32.mrb[0].mxu0
        %v982 = vadd.f32 %v780, %v981
        %v983 = vpop.f32.mrb[0].mxu0
        %v984 = vadd.f32 %v784, %v983
        %v985 = vpop.f32.mrb[0].mxu0
        %v986 = vadd.f32 %v780, %v985
        %v987 = vpop.f32.mrb[0].mxu0
        %v988 = vadd.f32 %v784, %v987
        %989 = vmatprep.mubr.bf16.mxu0 0
        %990 = vmatmul.mubr.bf16.gmra.mrb[0].mxu0 %v836
        %v991 = vpop.f32.mrb[0].mxu0
        %v992 = vadd.f32 %v780, %v991
        %v993 = vpop.f32.mrb[0].mxu0
        %v994 = vadd.f32 %v784, %v993
        %v995 = vpop.f32.mrb[0].mxu0
        %v996 = vadd.f32 %v780, %v995
        %v997 = vpop.f32.mrb[0].mxu0
        %v998 = vadd.f32 %v784, %v997
        %999 = vdwg.mxu0
        %v1000 = vmax.f32 %v889, 0.0
        %v1001 = vmax.f32 %v891, 0.0
        %v1002 = vmax.f32 %v962, 0.0
        %v1003 = vmax.f32 %v964, 0.0
        %v1004 = vmax.f32 %v893, 0.0
        %v1005 = vmax.f32 %v895, 0.0
        %v1006 = vmax.f32 %v966, 0.0
        %v1007 = vmax.f32 %v968, 0.0
        %v1008 = vmax.f32 %v899, 0.0
        %v1009 = vmax.f32 %v901, 0.0
        %v1010 = vmax.f32 %v972, 0.0
        %v1011 = vmax.f32 %v974, 0.0
        %v1012 = vmax.f32 %v903, 0.0
        %v1013 = vmax.f32 %v905, 0.0
        %v1014 = vmax.f32 %v976, 0.0
        %v1015 = vmax.f32 %v978, 0.0
        %v1016 = vmax.f32 %v909, 0.0
        %v1017 = vmax.f32 %v911, 0.0
        %v1018 = vmax.f32 %v982, 0.0
        %v1019 = vmax.f32 %v984, 0.0
        %v1020 = vmax.f32 %v913, 0.0
        %v1021 = vmax.f32 %v915, 0.0
        %v1022 = vmax.f32 %v986, 0.0
        %v1023 = vmax.f32 %v988, 0.0
        %v1024 = vmax.f32 %v919, 0.0
        %v1025 = vmax.f32 %v921, 0.0
        %v1026 = vmax.f32 %v992, 0.0
        %v1027 = vmax.f32 %v994, 0.0
        %v1028 = vmax.f32 %v923, 0.0
        %v1029 = vmax.f32 %v925, 0.0
        %v1030 = vmax.f32 %v996, 0.0
        %v1031 = vmax.f32 %v998, 0.0
        %s1032 = sld [smem:[#allocation3]]
        %v1033 = vmul.f32 %v1000, %v1000
        %v1034 = vmul.f32 %v1001, %v1001
        %v1035 = vmul.f32 %v1002, %v1002
        %v1036 = vmul.f32 %v1003, %v1003
        %v1037 = vmul.f32 %v1004, %v1004
        %v1038 = vmul.f32 %v1005, %v1005
        %v1039 = vmul.f32 %v1006, %v1006
        %v1040 = vmul.f32 %v1007, %v1007
        %v1041 = vmul.f32 %v1008, %v1008
        %v1042 = vmul.f32 %v1009, %v1009
        %v1043 = vmul.f32 %v1010, %v1010
        %v1044 = vmul.f32 %v1011, %v1011
        %v1045 = vmul.f32 %v1012, %v1012
        %v1046 = vmul.f32 %v1013, %v1013
        %v1047 = vmul.f32 %v1014, %v1014
        %v1048 = vmul.f32 %v1015, %v1015
        %v1049 = vmul.f32 %v1016, %v1016
        %v1050 = vmul.f32 %v1017, %v1017
        %v1051 = vmul.f32 %v1018, %v1018
        %v1052 = vmul.f32 %v1019, %v1019
        %v1053 = vmul.f32 %v1020, %v1020
        %v1054 = vmul.f32 %v1021, %v1021
        %v1055 = vmul.f32 %v1022, %v1022
        %v1056 = vmul.f32 %v1023, %v1023
        %v1057 = vmul.f32 %v1024, %v1024
        %v1058 = vmul.f32 %v1025, %v1025
        %v1059 = vmul.f32 %v1026, %v1026
        %v1060 = vmul.f32 %v1027, %v1027
        %v1061 = vmul.f32 %v1028, %v1028
        %v1062 = vmul.f32 %v1029, %v1029
        %v1063 = vmul.f32 %v1030, %v1030
        %v1064 = vmul.f32 %v1031, %v1031
        %v1065 = vadd.f32 %v1033, %v1034
        %v1066 = vadd.f32 %v1065, %v1035
        %v1067 = vadd.f32 %v1066, %v1036
        %1068 = vadd.xlane.f32.xlu0 %v1067
        %v1069 = vpop.xlane.xlu0 %1068
        %v1070 = vadd.f32 %v1037, %v1038
        %v1071 = vadd.f32 %v1070, %v1039
        %v1072 = vadd.f32 %v1071, %v1040
        %1073 = vadd.xlane.f32.xlu0 %v1072
        %v1074 = vpop.xlane.xlu0 %1073
        %v1075 = vadd.f32 %v1041, %v1042
        %v1076 = vadd.f32 %v1075, %v1043
        %v1077 = vadd.f32 %v1076, %v1044
        %1078 = vadd.xlane.f32.xlu0 %v1077
        %v1079 = vpop.xlane.xlu0 %1078
        %v1080 = vadd.f32 %v1045, %v1046
        %v1081 = vadd.f32 %v1080, %v1047
        %v1082 = vadd.f32 %v1081, %v1048
        %1083 = vadd.xlane.f32.xlu0 %v1082
        %v1084 = vpop.xlane.xlu0 %1083
        %v1085 = vadd.f32 %v1049, %v1050
        %v1086 = vadd.f32 %v1085, %v1051
        %v1087 = vadd.f32 %v1086, %v1052
        %1088 = vadd.xlane.f32.xlu0 %v1087
        %v1089 = vpop.xlane.xlu0 %1088
        %v1090 = vadd.f32 %v1053, %v1054
        %v1091 = vadd.f32 %v1090, %v1055
        %v1092 = vadd.f32 %v1091, %v1056
        %1093 = vadd.xlane.f32.xlu0 %v1092
        %v1094 = vpop.xlane.xlu0 %1093
        %v1095 = vadd.f32 %v1057, %v1058
        %v1096 = vadd.f32 %v1095, %v1059
        %v1097 = vadd.f32 %v1096, %v1060
        %1098 = vadd.xlane.f32.xlu0 %v1097
        %v1099 = vpop.xlane.xlu0 %1098
        %v1100 = vadd.f32 %v1061, %v1062
        %v1101 = vadd.f32 %v1100, %v1063
        %v1102 = vadd.f32 %v1101, %v1064
        %1103 = vadd.xlane.f32.xlu0 %v1102
        %v1104 = vpop.xlane.xlu0 %1103
        %v1105 = vmax.f32 %v1069, 1e-24
        %v1106 = vmax.f32 %v1074, 1e-24
        %v1107 = vmax.f32 %v1079, 1e-24
        %v1108 = vmax.f32 %v1084, 1e-24
        %v1109 = vmax.f32 %v1089, 1e-24
        %v1110 = vmax.f32 %v1094, 1e-24
        %v1111 = vmax.f32 %v1099, 1e-24
        %v1112 = vmax.f32 %v1104, 1e-24
        %v1113 = vlog2.pop %v1105
        %v1114 = vmul.f32 %v1113, 0.6931472
        %v1115 = vlog2.pop %v1106
        %v1116 = vmul.f32 %v1115, 0.6931472
        %v1117 = vlog2.pop %v1107
        %v1118 = vmul.f32 %v1117, 0.6931472
        %v1119 = vlog2.pop %v1108
        %v1120 = vmul.f32 %v1119, 0.6931472
        %v1121 = vlog2.pop %v1109
        %v1122 = vmul.f32 %v1121, 0.6931472
        %v1123 = vlog2.pop %v1110
        %v1124 = vmul.f32 %v1123, 0.6931472
        %v1125 = vlog2.pop %v1111
        %v1126 = vmul.f32 %v1125, 0.6931472
        %v1127 = vlog2.pop %v1112
        %v1128 = vmul.f32 %v1127, 0.6931472
        %v1129 = vmul.f32 %v1114, 0.5
        %v1130 = vmul.f32 %v1116, 0.5
        %v1131 = vmul.f32 %v1118, 0.5
        %v1132 = vmul.f32 %v1120, 0.5
        %v1133 = vmul.f32 %v1122, 0.5
        %v1134 = vmul.f32 %v1124, 0.5
        %v1135 = vmul.f32 %v1126, 0.5
        %v1136 = vmul.f32 %v1128, 0.5
        %v1137 = vmax.f32 %v1000, 1e-30
        %v1138 = vmax.f32 %v1001, 1e-30
        %v1139 = vmax.f32 %v1002, 1e-30
        %v1140 = vmax.f32 %v1003, 1e-30
        %v1141 = vmax.f32 %v1004, 1e-30
        %v1142 = vmax.f32 %v1005, 1e-30
        %v1143 = vmax.f32 %v1006, 1e-30
        %v1144 = vmax.f32 %v1007, 1e-30
        %v1145 = vmax.f32 %v1008, 1e-30
        %v1146 = vmax.f32 %v1009, 1e-30
        %v1147 = vmax.f32 %v1010, 1e-30
        %v1148 = vmax.f32 %v1011, 1e-30
        %v1149 = vmax.f32 %v1012, 1e-30
        %v1150 = vmax.f32 %v1013, 1e-30
        %v1151 = vmax.f32 %v1014, 1e-30
        %v1152 = vmax.f32 %v1015, 1e-30
        %v1153 = vmax.f32 %v1016, 1e-30
        %v1154 = vmax.f32 %v1017, 1e-30
        %v1155 = vmax.f32 %v1018, 1e-30
        %v1156 = vmax.f32 %v1019, 1e-30
        %v1157 = vmax.f32 %v1020, 1e-30
        %v1158 = vmax.f32 %v1021, 1e-30
        %v1159 = vmax.f32 %v1022, 1e-30
        %v1160 = vmax.f32 %v1023, 1e-30
        %v1161 = vmax.f32 %v1024, 1e-30
        %v1162 = vmax.f32 %v1025, 1e-30
        %v1163 = vmax.f32 %v1026, 1e-30
        %v1164 = vmax.f32 %v1027, 1e-30
        %v1165 = vmax.f32 %v1028, 1e-30
        %v1166 = vmax.f32 %v1029, 1e-30
        %v1167 = vmax.f32 %v1030, 1e-30
        %v1168 = vmax.f32 %v1031, 1e-30
        %v1169 = vlog2.pop %v1137
        %v1170 = vmul.f32 %v1169, 0.6931472
        %v1171 = vlog2.pop %v1138
        %v1172 = vmul.f32 %v1171, 0.6931472
        %v1173 = vlog2.pop %v1139
        %v1174 = vmul.f32 %v1173, 0.6931472
        %v1175 = vlog2.pop %v1140
        %v1176 = vmul.f32 %v1175, 0.6931472
        %v1177 = vlog2.pop %v1141
        %v1178 = vmul.f32 %v1177, 0.6931472
        %v1179 = vlog2.pop %v1142
        %v1180 = vmul.f32 %v1179, 0.6931472
        %v1181 = vlog2.pop %v1143
        %v1182 = vmul.f32 %v1181, 0.6931472
        %v1183 = vlog2.pop %v1144
        %v1184 = vmul.f32 %v1183, 0.6931472
        %v1185 = vlog2.pop %v1145
        %v1186 = vmul.f32 %v1185, 0.6931472
        %v1187 = vlog2.pop %v1146
        %v1188 = vmul.f32 %v1187, 0.6931472
        %v1189 = vlog2.pop %v1147
        %v1190 = vmul.f32 %v1189, 0.6931472
        %v1191 = vlog2.pop %v1148
        %v1192 = vmul.f32 %v1191, 0.6931472
        %v1193 = vlog2.pop %v1149
        %v1194 = vmul.f32 %v1193, 0.6931472
        %v1195 = vlog2.pop %v1150
        %v1196 = vmul.f32 %v1195, 0.6931472
        %v1197 = vlog2.pop %v1151
        %v1198 = vmul.f32 %v1197, 0.6931472
        %v1199 = vlog2.pop %v1152
        %v1200 = vmul.f32 %v1199, 0.6931472
        %v1201 = vlog2.pop %v1153
        %v1202 = vmul.f32 %v1201, 0.6931472
        %v1203 = vlog2.pop %v1154
        %v1204 = vmul.f32 %v1203, 0.6931472
        %v1205 = vlog2.pop %v1155
        %v1206 = vmul.f32 %v1205, 0.6931472
        %v1207 = vlog2.pop %v1156
        %v1208 = vmul.f32 %v1207, 0.6931472
        %v1209 = vlog2.pop %v1157
        %v1210 = vmul.f32 %v1209, 0.6931472
        %v1211 = vlog2.pop %v1158
        %v1212 = vmul.f32 %v1211, 0.6931472
        %v1213 = vlog2.pop %v1159
        %v1214 = vmul.f32 %v1213, 0.6931472
        %v1215 = vlog2.pop %v1160
        %v1216 = vmul.f32 %v1215, 0.6931472
        %v1217 = vlog2.pop %v1161
        %v1218 = vmul.f32 %v1217, 0.6931472
        %v1219 = vlog2.pop %v1162
        %v1220 = vmul.f32 %v1219, 0.6931472
        %v1221 = vlog2.pop %v1163
        %v1222 = vmul.f32 %v1221, 0.6931472
        %v1223 = vlog2.pop %v1164
        %v1224 = vmul.f32 %v1223, 0.6931472
        %v1225 = vlog2.pop %v1165
        %v1226 = vmul.f32 %v1225, 0.6931472
        %v1227 = vlog2.pop %v1166
        %v1228 = vmul.f32 %v1227, 0.6931472
        %v1229 = vlog2.pop %v1167
        %v1230 = vmul.f32 %v1229, 0.6931472
        %v1231 = vlog2.pop %v1168
        %v1232 = vmul.f32 %v1231, 0.6931472
        %v1233 = vsub.f32 %v1170, %v1129
        %v1234 = vsub.f32 %v1172, %v1129
        %v1235 = vsub.f32 %v1174, %v1129
        %v1236 = vsub.f32 %v1176, %v1129
        %v1237 = vsub.f32 %v1178, %v1130
        %v1238 = vsub.f32 %v1180, %v1130
        %v1239 = vsub.f32 %v1182, %v1130
        %v1240 = vsub.f32 %v1184, %v1130
        %v1241 = vsub.f32 %v1186, %v1131
        %v1242 = vsub.f32 %v1188, %v1131
        %v1243 = vsub.f32 %v1190, %v1131
        %v1244 = vsub.f32 %v1192, %v1131
        %v1245 = vsub.f32 %v1194, %v1132
        %v1246 = vsub.f32 %v1196, %v1132
        %v1247 = vsub.f32 %v1198, %v1132
        %v1248 = vsub.f32 %v1200, %v1132
        %v1249 = vsub.f32 %v1202, %v1133
        %v1250 = vsub.f32 %v1204, %v1133
        %v1251 = vsub.f32 %v1206, %v1133
        %v1252 = vsub.f32 %v1208, %v1133
        %v1253 = vsub.f32 %v1210, %v1134
        %v1254 = vsub.f32 %v1212, %v1134
        %v1255 = vsub.f32 %v1214, %v1134
        %v1256 = vsub.f32 %v1216, %v1134
        %v1257 = vsub.f32 %v1218, %v1135
        %v1258 = vsub.f32 %v1220, %v1135
        %v1259 = vsub.f32 %v1222, %v1135
        %v1260 = vsub.f32 %v1224, %v1135
        %v1261 = vsub.f32 %v1226, %v1136
        %v1262 = vsub.f32 %v1228, %v1136
        %v1263 = vsub.f32 %v1230, %v1136
        %v1264 = vsub.f32 %v1232, %v1136
        %v1265 = vmax.f32 %v1233, -13.815511
        %v1266 = vmax.f32 %v1234, -13.815511
        %v1267 = vmax.f32 %v1235, -13.815511
        %v1268 = vmax.f32 %v1236, -13.815511
        %v1269 = vmax.f32 %v1237, -13.815511
        %v1270 = vmax.f32 %v1238, -13.815511
        %v1271 = vmax.f32 %v1239, -13.815511
        %v1272 = vmax.f32 %v1240, -13.815511
        %v1273 = vmax.f32 %v1241, -13.815511
        %v1274 = vmax.f32 %v1242, -13.815511
        %v1275 = vmax.f32 %v1243, -13.815511
        %v1276 = vmax.f32 %v1244, -13.815511
        %v1277 = vmax.f32 %v1245, -13.815511
        %v1278 = vmax.f32 %v1246, -13.815511
        %v1279 = vmax.f32 %v1247, -13.815511
        %v1280 = vmax.f32 %v1248, -13.815511
        %v1281 = vmax.f32 %v1249, -13.815511
        %v1282 = vmax.f32 %v1250, -13.815511
        %v1283 = vmax.f32 %v1251, -13.815511
        %v1284 = vmax.f32 %v1252, -13.815511
        %v1285 = vmax.f32 %v1253, -13.815511
        %v1286 = vmax.f32 %v1254, -13.815511
        %v1287 = vmax.f32 %v1255, -13.815511
        %v1288 = vmax.f32 %v1256, -13.815511
        %v1289 = vmax.f32 %v1257, -13.815511
        %v1290 = vmax.f32 %v1258, -13.815511
        %v1291 = vmax.f32 %v1259, -13.815511
        %v1292 = vmax.f32 %v1260, -13.815511
        %v1293 = vmax.f32 %v1261, -13.815511
        %v1294 = vmax.f32 %v1262, -13.815511
        %v1295 = vmax.f32 %v1263, -13.815511
        %v1296 = vmax.f32 %v1264, -13.815511
        %v1297 = vstv %s1032
        %v1298 = vmul.f32 %v1297, %v1265
        %v1299 = vmul.f32 %v1297, %v1266
        %v1300 = vmul.f32 %v1297, %v1267
        %v1301 = vmul.f32 %v1297, %v1268
        %v1302 = vmul.f32 %v1297, %v1269
        %v1303 = vmul.f32 %v1297, %v1270
        %v1304 = vmul.f32 %v1297, %v1271
        %v1305 = vmul.f32 %v1297, %v1272
        %v1306 = vmul.f32 %v1297, %v1273
        %v1307 = vmul.f32 %v1297, %v1274
        %v1308 = vmul.f32 %v1297, %v1275
        %v1309 = vmul.f32 %v1297, %v1276
        %v1310 = vmul.f32 %v1297, %v1277
        %v1311 = vmul.f32 %v1297, %v1278
        %v1312 = vmul.f32 %v1297, %v1279
        %v1313 = vmul.f32 %v1297, %v1280
        %v1314 = vmul.f32 %v1297, %v1281
        %v1315 = vmul.f32 %v1297, %v1282
        %v1316 = vmul.f32 %v1297, %v1283
        %v1317 = vmul.f32 %v1297, %v1284
        %v1318 = vmul.f32 %v1297, %v1285
        %v1319 = vmul.f32 %v1297, %v1286
        %v1320 = vmul.f32 %v1297, %v1287
        %v1321 = vmul.f32 %v1297, %v1288
        %v1322 = vmul.f32 %v1297, %v1289
        %v1323 = vmul.f32 %v1297, %v1290
        %v1324 = vmul.f32 %v1297, %v1291
        %v1325 = vmul.f32 %v1297, %v1292
        %v1326 = vmul.f32 %v1297, %v1293
        %v1327 = vmul.f32 %v1297, %v1294
        %v1328 = vmul.f32 %v1297, %v1295
        %v1329 = vmul.f32 %v1297, %v1296
        %v1330 = vmul.f32 %v1298, 1.442695
        %v1331 = vpow.pop %v1330
        %v1332 = vmul.f32 %v1299, 1.442695
        %v1333 = vpow.pop %v1332
        %v1334 = vmul.f32 %v1300, 1.442695
        %v1335 = vpow.pop %v1334
        %v1336 = vmul.f32 %v1301, 1.442695
        %v1337 = vpow.pop %v1336
        %v1338 = vmul.f32 %v1302, 1.442695
        %v1339 = vpow.pop %v1338
        %v1340 = vmul.f32 %v1303, 1.442695
        %v1341 = vpow.pop %v1340
        %v1342 = vmul.f32 %v1304, 1.442695
        %v1343 = vpow.pop %v1342
        %v1344 = vmul.f32 %v1305, 1.442695
        %v1345 = vpow.pop %v1344
        %v1346 = vmul.f32 %v1306, 1.442695
        %v1347 = vpow.pop %v1346
        %v1348 = vmul.f32 %v1307, 1.442695
        %v1349 = vpow.pop %v1348
        %v1350 = vmul.f32 %v1308, 1.442695
        %v1351 = vpow.pop %v1350
        %v1352 = vmul.f32 %v1309, 1.442695
        %v1353 = vpow.pop %v1352
        %v1354 = vmul.f32 %v1310, 1.442695
        %v1355 = vpow.pop %v1354
        %v1356 = vmul.f32 %v1311, 1.442695
        %v1357 = vpow.pop %v1356
        %v1358 = vmul.f32 %v1312, 1.442695
        %v1359 = vpow.pop %v1358
        %v1360 = vmul.f32 %v1313, 1.442695
        %v1361 = vpow.pop %v1360
        %v1362 = vmul.f32 %v1314, 1.442695
        %v1363 = vpow.pop %v1362
        %v1364 = vmul.f32 %v1315, 1.442695
        %v1365 = vpow.pop %v1364
        %v1366 = vmul.f32 %v1316, 1.442695
        %v1367 = vpow.pop %v1366
        %v1368 = vmul.f32 %v1317, 1.442695
        %v1369 = vpow.pop %v1368
        %v1370 = vmul.f32 %v1318, 1.442695
        %v1371 = vpow.pop %v1370
        %v1372 = vmul.f32 %v1319, 1.442695
        %v1373 = vpow.pop %v1372
        %v1374 = vmul.f32 %v1320, 1.442695
        %v1375 = vpow.pop %v1374
        %v1376 = vmul.f32 %v1321, 1.442695
        %v1377 = vpow.pop %v1376
        %v1378 = vmul.f32 %v1322, 1.442695
        %v1379 = vpow.pop %v1378
        %v1380 = vmul.f32 %v1323, 1.442695
        %v1381 = vpow.pop %v1380
        %v1382 = vmul.f32 %v1324, 1.442695
        %v1383 = vpow.pop %v1382
        %v1384 = vmul.f32 %v1325, 1.442695
        %v1385 = vpow.pop %v1384
        %v1386 = vmul.f32 %v1326, 1.442695
        %v1387 = vpow.pop %v1386
        %v1388 = vmul.f32 %v1327, 1.442695
        %v1389 = vpow.pop %v1388
        %v1390 = vmul.f32 %v1328, 1.442695
        %v1391 = vpow.pop %v1390
        %v1392 = vmul.f32 %v1329, 1.442695
        %v1393 = vpow.pop %v1392
        %v1394 = vld [vmem:[#allocation2] sm:$0xf]
        %v1395 = vadd.f32 %v1331, %v1339
        %v1396 = vadd.f32 %v1395, %v1347
        %v1397 = vadd.f32 %v1396, %v1355
        %v1398 = vadd.f32 %v1397, %v1363
        %v1399 = vadd.f32 %v1398, %v1371
        %v1400 = vadd.f32 %v1399, %v1379
        %v1401 = vadd.f32 %v1400, %v1387
        %v1402 = vrot.slane %v1401, 4
        %v1403 = vadd.f32 %v1401, %v1402
        %v1404 = vrot.slane %v1403, 2
        %v1405 = vadd.f32 %v1403, %v1404
        %v1406 = vrot.slane %v1405, 1
        %v1407 = vadd.f32 %v1405, %v1406
        %v1408 = vadd.f32 %v1333, %v1341
        %v1409 = vadd.f32 %v1408, %v1349
        %v1410 = vadd.f32 %v1409, %v1357
        %v1411 = vadd.f32 %v1410, %v1365
        %v1412 = vadd.f32 %v1411, %v1373
        %v1413 = vadd.f32 %v1412, %v1381
        %v1414 = vadd.f32 %v1413, %v1389
        %v1415 = vrot.slane %v1414, 4
        %v1416 = vadd.f32 %v1414, %v1415
        %v1417 = vrot.slane %v1416, 2
        %v1418 = vadd.f32 %v1416, %v1417
        %v1419 = vrot.slane %v1418, 1
        %v1420 = vadd.f32 %v1418, %v1419
        %v1421 = vadd.f32 %v1335, %v1343
        %v1422 = vadd.f32 %v1421, %v1351
        %v1423 = vadd.f32 %v1422, %v1359
        %v1424 = vadd.f32 %v1423, %v1367
        %v1425 = vadd.f32 %v1424, %v1375
        %v1426 = vadd.f32 %v1425, %v1383
        %v1427 = vadd.f32 %v1426, %v1391
        %v1428 = vrot.slane %v1427, 4
        %v1429 = vadd.f32 %v1427, %v1428
        %v1430 = vrot.slane %v1429, 2
        %v1431 = vadd.f32 %v1429, %v1430
        %v1432 = vrot.slane %v1431, 1
        %v1433 = vadd.f32 %v1431, %v1432
        %v1434 = vadd.f32 %v1337, %v1345
        %v1435 = vadd.f32 %v1434, %v1353
        %v1436 = vadd.f32 %v1435, %v1361
        %v1437 = vadd.f32 %v1436, %v1369
        %v1438 = vadd.f32 %v1437, %v1377
        %v1439 = vadd.f32 %v1438, %v1385
        %v1440 = vadd.f32 %v1439, %v1393
        %v1441 = vrot.slane %v1440, 4
        %v1442 = vadd.f32 %v1440, %v1441
        %v1443 = vrot.slane %v1442, 2
        %v1444 = vadd.f32 %v1442, %v1443
        %v1445 = vrot.slane %v1444, 1
        %v1446 = vadd.f32 %v1444, %v1445
        %v1451 = vcombine.low %v1407, %v1420
        %v1452 = vcombine.low %v1433, %v1446
        %v1454 = vunpack.c.l.s4 1966171168
        %v1455 = vunpack.c.0.s8 %v1454
        %v1456 = vlaneseq
        %v1457 = vshrl.u32 %v1456, 7
        %v1458 = vsub.s32 %v1455, %v1457
        %v1459 = vrot.slane %v1451, %v1458
        %v1461 = vunpack.c.l.s4 1966171168
        %v1462 = vunpack.c.0.s8 %v1461
        %v1463 = vlaneseq
        %v1464 = vshrl.u32 %v1463, 7
        %v1465 = vsub.s32 %v1462, %v1464
        %v1466 = vrot.slane %v1452, %v1465
        %v1467 = vcombine.low %v1459, %v1466
        %v1469 = vunpack.c.l.s4 1966171168
        %v1470 = vunpack.c.0.s8 %v1469
        %v1471 = vlaneseq
        %v1472 = vshrl.u32 %v1471, 7
        %v1473 = vsub.s32 %v1470, %v1472
        %v1474 = vrot.slane %v1467, %v1473
        %v1476 = vadd.f32 %v1394, %v1474
        %v1477 = vlaneseq
        %vm1478 = vcmp.ge.s32.totalorder %v1477, 0
        %vm1479 = vcmp.lt.s32.totalorder %v1477, 512
        %vm1480 = vmand %vm1478, %vm1479
        %1481 = vst.msk [vmem:[#allocation2] sm:$0xf] %vm1480, %v1476
        // Predicated region
        $region49: #{tpu_custom_call.1} parent=43 // pred_check
          %p1482 = pneg %p277
        $region50: #{tpu_custom_call.1} parent=43 // pred_check_branch
          %1484 = sbr.rel (%p1482) target = $region52
        $region51: #{tpu_custom_call.1} parent=43 // pred_region
          %v1485 = vld [vmem:[#allocation2] sm:$0xf]
          %v1486 = vmul.f32 %v1485, 0.015625
          %v1487 = vlog2.pop %v1486
          %v1488 = vmul.f32 %v1487, 0.6931472
          %v1489 = vrcp.pop %v1297
          %v1490 = vmul.f32 %v1488, %v1489
          %v1491 = vmul.f32 %v1490, 1.442695
          %v1492 = vpow.pop %v1491
          %v1493 = vld [vmem:[%s4] sm:$0xff]
          %v1494 = vld [vmem:[%s4 + $0x8] sm:$0xff]
          %v1495 = vld [vmem:[%s4 + $0x10] sm:$0xff]
          %v1496 = vld [vmem:[%s4 + $0x18] sm:$0xff]
          %v1497 = vld [vmem:[%s4 + $0x20] sm:$0xff]
          %v1498 = vld [vmem:[%s4 + $0x28] sm:$0xff]
          %v1499 = vld [vmem:[%s4 + $0x30] sm:$0xff]
          %v1500 = vld [vmem:[%s4 + $0x38] sm:$0xff]
          %v1501 = vld [vmem:[%s4 + $0x40] sm:$0xff]
          %v1502 = vld [vmem:[%s4 + $0x48] sm:$0xff]
          %v1503 = vld [vmem:[%s4 + $0x50] sm:$0xff]
          %v1504 = vld [vmem:[%s4 + $0x58] sm:$0xff]
          %v1505 = vld [vmem:[%s4 + $0x60] sm:$0xff]
          %v1506 = vld [vmem:[%s4 + $0x68] sm:$0xff]
          %v1507 = vld [vmem:[%s4 + $0x70] sm:$0xff]
          %v1508 = vld [vmem:[%s4 + $0x78] sm:$0xff]
          %v1509 = vld [vmem:[%s4 + $0x80] sm:$0xff]
          %v1510 = vld [vmem:[%s4 + $0x88] sm:$0xff]
          %v1511 = vld [vmem:[%s4 + $0x90] sm:$0xff]
          %v1512 = vld [vmem:[%s4 + $0x98] sm:$0xff]
          %v1513 = vld [vmem:[%s4 + $0xa0] sm:$0xff]
          %v1514 = vld [vmem:[%s4 + $0xa8] sm:$0xff]
          %v1515 = vld [vmem:[%s4 + $0xb0] sm:$0xff]
          %v1516 = vld [vmem:[%s4 + $0xb8] sm:$0xff]
          %v1517 = vld [vmem:[%s4 + $0xc0] sm:$0xff]
          %v1518 = vld [vmem:[%s4 + $0xc8] sm:$0xff]
          %v1519 = vld [vmem:[%s4 + $0xd0] sm:$0xff]
          %v1520 = vld [vmem:[%s4 + $0xd8] sm:$0xff]
          %v1521 = vld [vmem:[%s4 + $0xe0] sm:$0xff]
          %v1522 = vld [vmem:[%s4 + $0xe8] sm:$0xff]
          %v1523 = vld [vmem:[%s4 + $0xf0] sm:$0xff]
          %v1524 = vld [vmem:[%s4 + $0xf8] sm:$0xff]
          %v1525 = vld [vmem:[%s4 + $0x100] sm:$0xff]
          %v1526 = vld [vmem:[%s4 + $0x108] sm:$0xff]
          %v1527 = vld [vmem:[%s4 + $0x110] sm:$0xff]
          %v1528 = vld [vmem:[%s4 + $0x118] sm:$0xff]
          %v1529 = vld [vmem:[%s4 + $0x120] sm:$0xff]
          %v1530 = vld [vmem:[%s4 + $0x128] sm:$0xff]
          %v1531 = vld [vmem:[%s4 + $0x130] sm:$0xff]
          %v1532 = vld [vmem:[%s4 + $0x138] sm:$0xff]
          %v1533 = vld [vmem:[%s4 + $0x140] sm:$0xff]
          %v1534 = vld [vmem:[%s4 + $0x148] sm:$0xff]
          %v1535 = vld [vmem:[%s4 + $0x150] sm:$0xff]
          %v1536 = vld [vmem:[%s4 + $0x158] sm:$0xff]
          %v1537 = vld [vmem:[%s4 + $0x160] sm:$0xff]
          %v1538 = vld [vmem:[%s4 + $0x168] sm:$0xff]
          %v1539 = vld [vmem:[%s4 + $0x170] sm:$0xff]
          %v1540 = vld [vmem:[%s4 + $0x178] sm:$0xff]
          %v1541 = vld [vmem:[%s4 + $0x180] sm:$0xff]
          %v1542 = vld [vmem:[%s4 + $0x188] sm:$0xff]
          %v1543 = vld [vmem:[%s4 + $0x190] sm:$0xff]
          %v1544 = vld [vmem:[%s4 + $0x198] sm:$0xff]
          %v1545 = vld [vmem:[%s4 + $0x1a0] sm:$0xff]
          %v1546 = vld [vmem:[%s4 + $0x1a8] sm:$0xff]
          %v1547 = vld [vmem:[%s4 + $0x1b0] sm:$0xff]
          %v1548 = vld [vmem:[%s4 + $0x1b8] sm:$0xff]
          %v1549 = vld [vmem:[%s4 + $0x1c0] sm:$0xff]
          %v1550 = vld [vmem:[%s4 + $0x1c8] sm:$0xff]
          %v1551 = vld [vmem:[%s4 + $0x1d0] sm:$0xff]
          %v1552 = vld [vmem:[%s4 + $0x1d8] sm:$0xff]
          %v1553 = vld [vmem:[%s4 + $0x1e0] sm:$0xff]
          %v1554 = vld [vmem:[%s4 + $0x1e8] sm:$0xff]
          %v1555 = vld [vmem:[%s4 + $0x1f0] sm:$0xff]
          %v1556 = vld [vmem:[%s4 + $0x1f8] sm:$0xff]
          %v1557 = vld [vmem:[%s5] sm:$0x1]
          %v1559 = vlaneseq
          %v1560 = vshrl.u32 %v1559, 7
          %v1561 = vsub.s32 0, %v1560
          %v1562 = vrot.slane %v1492, %v1561
          %v1563 = vlaneseq
          %v1564 = vshrl.u32 %v1563, 7
          %v1565 = vsub.s32 1, %v1564
          %v1566 = vrot.slane %v1492, %v1565
          %v1567 = vlaneseq
          %v1568 = vshrl.u32 %v1567, 7
          %v1569 = vsub.s32 2, %v1568
          %v1570 = vrot.slane %v1492, %v1569
          %v1571 = vlaneseq
          %v1572 = vshrl.u32 %v1571, 7
          %v1573 = vsub.s32 3, %v1572
          %v1574 = vrot.slane %v1492, %v1573
          %1579 = vmatprep.subr.mxu0 0.0
          %1580 = vmatpush1.msra.mxu0 %v1493
          %1581 = vmatprep.subr.mxu0 0.0
          %1582 = vmatpush1.msra.mxu0 %v1494
          %1583 = vmatprep.subr.mxu0 0.0
          %1584 = vmatpush1.msra.mxu0 %v1495
          %1585 = vmatprep.subr.mxu0 0.0
          %1586 = vmatpush1.msra.mxu0 %v1496
          %1587 = vmatprep.subr.mxu0 0.0
          %1588 = vmatpush1.msra.mxu0 %v1497
          %1589 = vmatprep.subr.mxu0 0.0
          %1590 = vmatpush1.msra.mxu0 %v1498
          %1591 = vmatprep.subr.mxu0 0.0
          %1592 = vmatpush1.msra.mxu0 %v1499
          %1593 = vmatprep.subr.mxu0 0.0
          %1594 = vmatpush1.msra.mxu0 %v1500
          %1595 = vmatprep.subr.mxu0 0.0
          %1596 = vmatpush1.msra.mxu0 %v1501
          %1597 = vmatprep.subr.mxu0 0.0
          %1598 = vmatpush1.msra.mxu0 %v1502
          %1599 = vmatprep.subr.mxu0 0.0
          %1600 = vmatpush1.msra.mxu0 %v1503
          %1601 = vmatprep.subr.mxu0 0.0
          %1602 = vmatpush1.msra.mxu0 %v1504
          %1603 = vmatprep.subr.mxu0 0.0
          %1604 = vmatpush1.msra.mxu0 %v1505
          %1605 = vmatprep.subr.mxu0 0.0
          %1606 = vmatpush1.msra.mxu0 %v1506
          %1607 = vmatprep.subr.mxu0 0.0
          %1608 = vmatpush1.msra.mxu0 %v1507
          %1609 = vmatprep.subr.mxu0 0.0
          %1610 = vmatpush1.msra.mxu0 %v1508
          %1611 = vmatprep.subr.mxu0 0.0
          %1612 = vmatpush1.msra.mxu0 %v1509
          %1613 = vmatprep.subr.mxu0 0.0
          %1614 = vmatpush1.msra.mxu0 %v1510
          %1615 = vmatprep.subr.mxu0 0.0
          %1616 = vmatpush1.msra.mxu0 %v1511
          %1617 = vmatprep.subr.mxu0 0.0
          %1618 = vmatpush1.msra.mxu0 %v1512
          %1619 = vmatprep.subr.mxu0 0.0
          %1620 = vmatpush1.msra.mxu0 %v1513
          %1621 = vmatprep.subr.mxu0 0.0
          %1622 = vmatpush1.msra.mxu0 %v1514
          %1623 = vmatprep.subr.mxu0 0.0
          %1624 = vmatpush1.msra.mxu0 %v1515
          %1625 = vmatprep.subr.mxu0 0.0
          %1626 = vmatpush1.msra.mxu0 %v1516
          %1627 = vmatprep.subr.mxu0 0.0
          %1628 = vmatpush1.msra.mxu0 %v1517
          %1629 = vmatprep.subr.mxu0 0.0
          %1630 = vmatpush1.msra.mxu0 %v1518
          %1631 = vmatprep.subr.mxu0 0.0
          %1632 = vmatpush1.msra.mxu0 %v1519
          %1633 = vmatprep.subr.mxu0 0.0
          %1634 = vmatpush1.msra.mxu0 %v1520
          %1635 = vmatprep.subr.mxu0 0.0
          %1636 = vmatpush1.msra.mxu0 %v1521
          %1637 = vmatprep.subr.mxu0 0.0
          %1638 = vmatpush1.msra.mxu0 %v1522
          %1639 = vmatprep.subr.mxu0 0.0
          %1640 = vmatpush1.msra.mxu0 %v1523
          %1641 = vmatprep.subr.mxu0 0.0
          %1642 = vmatpush1.msra.mxu0 %v1524
          %1643 = vmatprep.mubr.f32.mxu0 %v1566
          %1644 = vmatmul.mubr.f32.gmra.mrb[0].mxu0 %v1562
          %v1645 = vpop.f32.mrb[0].mxu0
          %v1646 = vadd.f32 %v1557, %v1645
          %v1647 = vpop.f32.mrb[0].mxu0
          %1648 = vdwg.mxu0
          %1649 = vmatprep.subr.mxu0 0.0
          %1650 = vmatpush1.msra.mxu0 %v1525
          %1651 = vmatprep.subr.mxu0 0.0
          %1652 = vmatpush1.msra.mxu0 %v1526
          %1653 = vmatprep.subr.mxu0 0.0
          %1654 = vmatpush1.msra.mxu0 %v1527
          %1655 = vmatprep.subr.mxu0 0.0
          %1656 = vmatpush1.msra.mxu0 %v1528
          %1657 = vmatprep.subr.mxu0 0.0
          %1658 = vmatpush1.msra.mxu0 %v1529
          %1659 = vmatprep.subr.mxu0 0.0
          %1660 = vmatpush1.msra.mxu0 %v1530
          %1661 = vmatprep.subr.mxu0 0.0
          %1662 = vmatpush1.msra.mxu0 %v1531
          %1663 = vmatprep.subr.mxu0 0.0
          %1664 = vmatpush1.msra.mxu0 %v1532
          %1665 = vmatprep.subr.mxu0 0.0
          %1666 = vmatpush1.msra.mxu0 %v1533
          %1667 = vmatprep.subr.mxu0 0.0
          %1668 = vmatpush1.msra.mxu0 %v1534
          %1669 = vmatprep.subr.mxu0 0.0
          %1670 = vmatpush1.msra.mxu0 %v1535
          %1671 = vmatprep.subr.mxu0 0.0
          %1672 = vmatpush1.msra.mxu0 %v1536
          %1673 = vmatprep.subr.mxu0 0.0
          %1674 = vmatpush1.msra.mxu0 %v1537
          %1675 = vmatprep.subr.mxu0 0.0
          %1676 = vmatpush1.msra.mxu0 %v1538
          %1677 = vmatprep.subr.mxu0 0.0
          %1678 = vmatpush1.msra.mxu0 %v1539
          %1679 = vmatprep.subr.mxu0 0.0
          %1680 = vmatpush1.msra.mxu0 %v1540
          %1681 = vmatprep.subr.mxu0 0.0
          %1682 = vmatpush1.msra.mxu0 %v1541
          %1683 = vmatprep.subr.mxu0 0.0
          %1684 = vmatpush1.msra.mxu0 %v1542
          %1685 = vmatprep.subr.mxu0 0.0
          %1686 = vmatpush1.msra.mxu0 %v1543
          %1687 = vmatprep.subr.mxu0 0.0
          %1688 = vmatpush1.msra.mxu0 %v1544
          %1689 = vmatprep.subr.mxu0 0.0
          %1690 = vmatpush1.msra.mxu0 %v1545
          %1691 = vmatprep.subr.mxu0 0.0
          %1692 = vmatpush1.msra.mxu0 %v1546
          %1693 = vmatprep.subr.mxu0 0.0
          %1694 = vmatpush1.msra.mxu0 %v1547
          %1695 = vmatprep.subr.mxu0 0.0
          %1696 = vmatpush1.msra.mxu0 %v1548
          %1697 = vmatprep.subr.mxu0 0.0
          %1698 = vmatpush1.msra.mxu0 %v1549
          %1699 = vmatprep.subr.mxu0 0.0
          %1700 = vmatpush1.msra.mxu0 %v1550
          %1701 = vmatprep.subr.mxu0 0.0
          %1702 = vmatpush1.msra.mxu0 %v1551
          %1703 = vmatprep.subr.mxu0 0.0
          %1704 = vmatpush1.msra.mxu0 %v1552
          %1705 = vmatprep.subr.mxu0 0.0
          %1706 = vmatpush1.msra.mxu0 %v1553
          %1707 = vmatprep.subr.mxu0 0.0
          %1708 = vmatpush1.msra.mxu0 %v1554
          %1709 = vmatprep.subr.mxu0 0.0
          %1710 = vmatpush1.msra.mxu0 %v1555
          %1711 = vmatprep.subr.mxu0 0.0
          %1712 = vmatpush1.msra.mxu0 %v1556
          %1713 = vmatprep.mubr.f32.mxu0 %v1574
          %1714 = vmatmul.mubr.f32.gmra.mrb[0].mxu0 %v1570
          %v1715 = vpop.f32.mrb[0].mxu0
          %v1716 = vadd.f32 %v1646, %v1715
          %v1717 = vpop.f32.mrb[0].mxu0
          %1718 = vdwg.mxu0
          %v1719 = vmul.f32 %v1716, %v1716
          %vm1720 = vcmask 1040384
          %v1721 = vsel %vm1720, %v1719, 0.0
          %1722 = vadd.xlane.f32.xlu0 %v1721
          %v1723 = vpop.xlane.xlu0 %1722
          %v1724 = vmax.f32 %v1723, 1e-24
          %v1725 = vrsqrt.pop %v1724
          %v1726 = vmul.f32 %v1716, %v1725
          %1727 = vst [vmem:[%s266] sm:$0x1] %v1726
        $region52: #{tpu_custom_call.1} parent=43 // pred_fallthru
          _
        %s1728 = sand.u32 %s174, 1
        %s1729 = scalar_lea.sflag [#allocation5], %s1728
        %s1730 = sand.u32 %s174, 1
        %s1731 = scalar_lea.vmem [#allocation4], %s1730
        // Predicated region
        $region53: #{tpu_custom_call.1} parent=43 // pred_check
          %p1732 = pneg %p184
        $region54: #{tpu_custom_call.1} parent=43 // pred_check_branch
          %1734 = sbr.rel (%p1732) target = $region56
        $region55: #{tpu_custom_call.1} parent=43 // pred_region
          %s1736 = ssub.s32 16, 16
          %1737 = vsyncadd %s1729, %s1736
          %s1738 = smul.addr %s25, 16
          %s1739 = scalar_lea.hbm %s6, %s1738
          %s1741 = sshll.u32 %s1731, 4
          %s1742 = int_to_ptr.vmem [resolvable:$true] %s1741
          %1744 = dma.vmem_to_hbm [thread:$0]  %s1742, 16, %s1739, %s1729
        $region56: #{tpu_custom_call.1} parent=43 // pred_fallthru
          _
      $region44: #{tpu_custom_call.1} parent=5 // pred_fallthru
        _
      %p1745 = scmp.le.s32.totalorder 2, %s16
      // Predicated region
      $region57: #{tpu_custom_call.1} parent=5 // pred_check
        %p1746 = pneg %p1745
      $region58: #{tpu_custom_call.1} parent=5 // pred_check_branch
        %1748 = sbr.rel (%p1746) target = $region60
      $region59: #{tpu_custom_call.1} parent=5 // pred_region
        %s1749 = ssub.s32 %s16, 2
        // Predicated region
        $region61: #{tpu_custom_call.1} parent=59 // pred_check
          %p1750 = pneg %p190
        $region62: #{tpu_custom_call.1} parent=59 // pred_check_branch
          %1752 = sbr.rel (%p1750) target = $region64
        $region63: #{tpu_custom_call.1} parent=59 // pred_region
          %s1753 = sand.u32 %s175, 1
          %s1754 = scalar_lea.sflag [#allocation5], %s1753
          %s1755 = sand.u32 %s175, 1
          %s1756 = scalar_lea.vmem [#allocation4], %s1755
          %1757 = dma.done %s1754, 16
        $region64: #{tpu_custom_call.1} parent=59 // pred_fallthru
          _
      $region60: #{tpu_custom_call.1} parent=5 // pred_fallthru
        _
    $region6: #{tpu_custom_call.1} parent=1 // loop_footer
      %s20 = sadd.s32 1, %s16
    $region7: #{tpu_custom_call.1} parent=1 // loop_footer_branch
      %15 = sbr.rel target = $region3
    $region8: #{tpu_custom_call.1} parent=1 // loop_exit
      _
    %1758 = vsyncpa [#allocation5], 1
    %s1759 = scalar_lea.sflag [#allocation5], 1
    %1760 = vsyncpa %s1759, 1

</llo_original>
